<compile_context>
chip_gen: v7x
topology: tpu7x:2x2x1
jax: 0.10.0
libtpu: 0.0.40
codegen_flags: <defaults>
</compile_context>

<pallas_src>
import functools

import jax
import jax.numpy as jnp
from jax import lax
from jax.experimental import pallas as pl
from jax.experimental.pallas import tpu as pltpu

_HALO = 32  # rows per halo block; multiple of 8/16/32 so f32/bf16/int8 inputs all pack cleanly


def _seg_stats_kernel(lg_ref, mk_ref, lg_ab_ref, lg_be_ref, mk_ab_ref, mk_be_ref,
                      stats_ref, *, H, W, Hp, Wp, tile_h):
    """Per-(image, strip) sufficient statistics for CE + Dice + boundary losses.

    Blocks: logits/masks (1, T, Wp) strip + (1, 32, Wp) halo blocks above/below;
    stats (1, 1, 9, Wp) rows = sublane partials of
    [sum(bce), sum(p*y), sum(p), sum(y), sum(gp*gt), sum(gp), sum(gt), max(gp), max(gt)].
    """
    T = tile_h
    s_idx = pl.program_id(1)
    n_strips = pl.num_programs(1)

    need_row = Hp != H          # static Python bools -> masks compiled out when aligned
    need_col = Wp != W

    # ---- load + cast the current strip (native dtype -> f32 in-kernel) ----
    x = lg_ref[0].astype(jnp.float32)                      # (T, Wp) logits
    x = jnp.where(jnp.isnan(x), 0.0, x)                    # reference NaN guard
    y = (mk_ref[0] > 0).astype(jnp.float32)                # binary target (0 in padding)

    # ---- hoisted iotas / validity mask (only emitted when padding exists) ----
    row_iota = lax.broadcasted_iota(jnp.int32, (T, 1), 0)
    col_iota = lax.broadcasted_iota(jnp.int32, (1, Wp), 1)
    col_v = (col_iota < W) if need_col else None           # (1, Wp)
    row_v = ((s_idx * T + row_iota) < H) if need_row else None  # (T, 1)
    if need_row and need_col:
        valid = jnp.logical_and(row_v, col_v).astype(jnp.float32)
    elif need_row:
        valid = row_v.astype(jnp.float32)
    elif need_col:
        valid = col_v.astype(jnp.float32)
    else:
        valid = None

    # ---- BCE + sigmoid: one exp + one log per element, EUP reciprocal + 1 Newton step ----
    e = jnp.exp(-jnp.abs(x))
    den = 1.0 + e
    inv = pl.reciprocal(den, approx=True)
    inv = inv * (2.0 - den * inv)
    softplus = jnp.log(den) - ((den - 1.0) - e) * inv       # compensated log1p(e)
    bce = jnp.maximum(x, 0.0) - x * y + softplus
    p = jnp.where(x >= 0.0, inv, e * inv)                   # sigmoid(x)
    if valid is not None:
        bce = bce * valid
        p = p * valid                                       # zero pads -> exact conv zero-padding

    # ---- halo rows (the row just above / below this strip) ----
    def _sigmoid(v):
        v = jnp.where(jnp.isnan(v), 0.0, v)
        ee = jnp.exp(-jnp.abs(v))
        dd = 1.0 + ee
        ii = pl.reciprocal(dd, approx=True)
        ii = ii * (2.0 - dd * ii)
        return jnp.where(v >= 0.0, ii, ee * ii)

    above_gate = (s_idx > 0).astype(jnp.float32)            # first strip: zero row above
    below_gate = (s_idx < n_strips - 1).astype(jnp.float32)  # last strip: zero row below

    p_ab = _sigmoid(lg_ab_ref[0].astype(jnp.float32)[_HALO - 1:_HALO, :]) * above_gate
    p_be = _sigmoid(lg_be_ref[0].astype(jnp.float32)[0:1, :]) * below_gate
    y_ab = (mk_ab_ref[0][_HALO - 1:_HALO, :] > 0).astype(jnp.float32) * above_gate
    y_be = (mk_be_ref[0][0:1, :] > 0).astype(jnp.float32) * below_gate
    if need_col:
        col_f = col_v.astype(jnp.float32)
        p_ab = p_ab * col_f
        p_be = p_be * col_f
        # y halos are already zero in padded columns (mask padded with zeros).

    # ---- 3x3 Sobel (separable) via XLU rolls; halo rows enter via one select per vert. shift ----
    is_row0 = row_iota == 0
    is_rowL = row_iota == T - 1

    def sh_dn(a, above_row):   # a[i-1, j]; row 0 takes the halo row above
        return jnp.where(is_row0, above_row, pltpu.roll(a, shift=1, axis=0))

    def sh_up(a, below_row):   # a[i+1, j]; row T-1 takes the halo row below
        return jnp.where(is_rowL, below_row, pltpu.roll(a, shift=T - 1, axis=0))

    if need_col:
        # A zero pad column exists and p/y are zeroed there, so lane-roll wraps already
        # reproduce conv zero padding; padded-column outputs are masked before reduction.
        def sh_rt(a):          # a[i, j-1]
            return pltpu.roll(a, shift=1, axis=1)

        def sh_lt(a):          # a[i, j+1]
            return pltpu.roll(a, shift=Wp - 1, axis=1)
    else:
        first_col = col_iota == 0           # hoisted once, reused across all shifts
        last_col = col_iota == Wp - 1

        def sh_rt(a):
            return jnp.where(first_col, 0.0, pltpu.roll(a, shift=1, axis=1))

        def sh_lt(a):
            return jnp.where(last_col, 0.0, pltpu.roll(a, shift=Wp - 1, axis=1))

    def boundaries(img, above, below):
        srow = sh_dn(img, above) + 2.0 * img + sh_up(img, below)   # [1,2,1]^T row smoothing
        gx = sh_lt(srow) - sh_rt(srow)                              # [-1,0,1]  col derivative
        t = sh_rt(img) + 2.0 * img + sh_lt(img)                     # [1,2,1]   col smoothing
        t_ab = sh_rt(above) + 2.0 * above + sh_lt(above)
        t_be = sh_rt(below) + 2.0 * below + sh_lt(below)
        gy = sh_up(t, t_be) - sh_dn(t, t_ab)                        # [-1,0,1]^T row derivative
        return jnp.sqrt(gx * gx + gy * gy)

    gp = boundaries(p, p_ab, p_be)
    gt = boundaries(y, y_ab, y_be)
    if valid is not None:
        gp = gp * valid
        gt = gt * valid

    # ---- fused reduction epilogue: sublane partials, nine lane-dense row stores ----
    parts = (
        jnp.sum(bce, axis=0, keepdims=True),
        jnp.sum(p * y, axis=0, keepdims=True),
        jnp.sum(p, axis=0, keepdims=True),
        jnp.sum(y, axis=0, keepdims=True),
        jnp.sum(gp * gt, axis=0, keepdims=True),
        jnp.sum(gp, axis=0, keepdims=True),
        jnp.sum(gt, axis=0, keepdims=True),
        jnp.max(gp, axis=0, keepdims=True),
        jnp.max(gt, axis=0, keepdims=True),
    )
    for k, part in enumerate(parts):
        stats_ref[0, 0, pl.ds(k, 1), :] = part


def _round_up(n, m):
    return ((n + m - 1) // m) * m


def _vmem_capacity_bytes():
    try:
        return int(pltpu.get_tpu_info().vmem_capacity_bytes)
    except Exception:
        return 64 * 1024 * 1024     # conservative (v7x-sized) fallback


def _pick_tile_h(H, W, vmem_bytes):
    """Generation-aware strip height (multiple of the 32-row halo block)."""
    Wp = _round_up(W, 128)
    preferred = 512 if vmem_bytes >= 96 * 1024 * 1024 else 256   # big strips v5e/v6e, smaller v7x
    per_row_bytes = 22 * Wp * 4                                  # ~f32 temporaries per strip row
    fit = max(_HALO, (int(vmem_bytes * 0.6) // per_row_bytes) // _HALO * _HALO)
    preferred = min(preferred, fit)
    n_strips = max(1, -(-H // preferred))
    return _round_up(-(-H // n_strips), _HALO)


def _compute_stats(logits_bhw, masks_bhw):
    """Returns (sums[B, 7], maxs[B, 2]) of per-image sufficient statistics."""
    B, H, W = logits_bhw.shape
    vmem_bytes = _vmem_capacity_bytes()
    tile_h = _pick_tile_h(H, W, vmem_bytes)
    Hp = _round_up(H, tile_h)
    Wp = _round_up(W, 128)
    n_strips = Hp // tile_h
    bps = tile_h // _HALO                                   # halo blocks per strip

    # Pad only when needed; inputs keep their native dtype (cast per tile inside the kernel).
    if (Hp, Wp) != (H, W):
        pad = ((0, 0), (0, Hp - H), (0, Wp - W))
        logits_bhw = jnp.pad(logits_bhw, pad)
        masks_bhw = jnp.pad(masks_bhw, pad)

    main_spec = pl.BlockSpec((1, tile_h, Wp), lambda b, s: (b, s, 0))
    above_spec = pl.BlockSpec(
        (1, _HALO, Wp), lambda b, s: (b, jnp.maximum(s * bps - 1, 0), 0))
    below_spec = pl.BlockSpec(
        (1, _HALO, Wp), lambda b, s: (b, jnp.minimum((s + 1) * bps, Hp // _HALO - 1), 0))

    kernel = functools.partial(_seg_stats_kernel, H=H, W=W, Hp=Hp, Wp=Wp, tile_h=tile_h)

    # VMEM budget: double-buffered input blocks + f32 temporaries, capped below physical VMEM.
    in_bytes = (tile_h + 2 * _HALO) * Wp * (
        logits_bhw.dtype.itemsize + masks_bhw.dtype.itemsize)
    est = 2 * in_bytes + 22 * tile_h * Wp * 4 + 4 * 9 * Wp * 4
    vmem_limit = int(min(max(est, 32 * 1024 * 1024), int(vmem_bytes * 0.8)))

    stats = pl.pallas_call(
        kernel,
        out_shape=jax.ShapeDtypeStruct((B, n_strips, 9, Wp), jnp.float32),
        grid=(B, n_strips),
        in_specs=[main_spec, main_spec, above_spec, below_spec, above_spec, below_spec],
        out_specs=pl.BlockSpec((1, 1, 9, Wp), lambda b, s: (b, s, 0, 0)),
        compiler_params=pltpu.CompilerParams(
            dimension_semantics=("parallel", "parallel"),    # no carry -> both TCs share all steps
            vmem_limit_bytes=vmem_limit,
        ),
    )(logits_bhw, masks_bhw, logits_bhw, logits_bhw, masks_bhw, masks_bhw)

    sums = jnp.sum(stats[:, :, :7, :], axis=(1, 3))          # (B, 7) tiny cross-strip/lane finish
    maxs = jnp.max(stats[:, :, 7:, :], axis=(1, 3))          # (B, 2)
    return sums, maxs


def binary_segmentation_loss(outputs, targets, ce_weight=0.5, dice_weight=1.5,
                             boundary_weight=1.0, smooth=1.0):
    logits = outputs['logits']
    if logits.ndim == 5:
        B, T = logits.shape[:2]
        logits = logits.reshape(B * T, 1, logits.shape[3], logits.shape[4])
    masks = targets['masks']
    if masks.ndim == 4:
        B, T = masks.shape[:2]
        masks = masks.reshape(B * T, masks.shape[2], masks.shape[3])

    # TODO(synk): F.interpolate (bilinear resize when logits/mask spatial sizes differ) is not
    # implemented; inputs are assumed to have matching spatial shapes.
    logits_bhw = logits[:, 0, :, :]            # squeeze channel -> [B, H, W]

    sums, maxs = _compute_stats(logits_bhw, masks)
    B, H, W = logits_bhw.shape
    n_pix = H * W

    bce_sum = sums[:, 0]
    pt, ps, ts = sums[:, 1], sums[:, 2], sums[:, 3]
    gpgt, gps, gts = sums[:, 4], sums[:, 5], sums[:, 6]
    gpm, gtm = maxs[:, 0], maxs[:, 1]

    # BCEWithLogitsLoss(reduction='mean') over all B*1*H*W elements.
    ce_loss = (jnp.sum(bce_sum) / (B * n_pix)) * ce_weight

    # Dice loss (per-image, then mean).
    dice = (2.0 * pt + smooth) / (ps + ts + smooth)
    dice_loss = (1.0 - jnp.mean(dice)) * dice_weight

    # Boundary loss: global-max normalization, per-image IoU, then mean.
    if boundary_weight > 0:
        mp = jnp.max(gpm) + 1e-8
        mt = jnp.max(gtm) + 1e-8
        inter = gpgt / (mp * mt)
        union = gps / mp + gts / mt - inter
        biou = (inter + smooth) / (union + smooth)
        boundary_loss = (1.0 - jnp.mean(biou)) * boundary_weight
    else:
        boundary_loss = jnp.float32(0.0)

    total = ce_loss + dice_loss + boundary_loss
    # Reference falls back to 1.0 if the total loss is NaN.
    total = jnp.where(jnp.isnan(total), jnp.float32(1.0), total)
    return {'loss': total, 'ce_loss': ce_loss, 'dice_loss': dice_loss,
            'boundary_loss': boundary_loss}


if __name__ == "__main__":
    key = jax.random.PRNGKey(0)
    k1, k2 = jax.random.split(key)
    B, H, W = 2, 16, 16
    logits = jax.random.normal(k1, (B, 1, H, W), dtype=jnp.float32)          # [B,1,H,W]
    masks = (jax.random.uniform(k2, (B, H, W)) > 0.5).astype(jnp.float32)    # [B,H,W]

    out = binary_segmentation_loss({'logits': logits}, {'masks': masks})
    out = jax.tree_util.tree_map(jax.block_until_ready, out)

    assert bool(jnp.isfinite(out['loss'])), "loss is not finite"
    print("KERNEL_OK")
</pallas_src>

<mosaic_0001>
module attributes {stable_mosaic.version = 11 : i64} {
  func.func @_seg_stats_kernel(%arg0: i32, %arg1: i32, %arg2: memref<1x32x128xf32, #tpu.memory_space<vmem>>, %arg3: memref<1x32x128xf32, #tpu.memory_space<vmem>>, %arg4: memref<1x32x128xf32, #tpu.memory_space<vmem>>, %arg5: memref<1x32x128xf32, #tpu.memory_space<vmem>>, %arg6: memref<1x32x128xf32, #tpu.memory_space<vmem>>, %arg7: memref<1x32x128xf32, #tpu.memory_space<vmem>>, %arg8: memref<1x1x9x128xf32, #tpu.memory_space<vmem>>) attributes {dimension_semantics = [#tpu.dimension_semantics<parallel>, #tpu.dimension_semantics<parallel>], iteration_bounds = array<i64: 2, 1>, scalar_prefetch = 0 : i64, scratch_operands = 0 : i64, tpu.core_type = #tpu.core_type<tc>, window_params = [{transform_indices = @transform_0, window_bounds = array<i64: 1, 32, 128>}, {transform_indices = @transform_1, window_bounds = array<i64: 1, 32, 128>}, {transform_indices = @transform_2, window_bounds = array<i64: 1, 32, 128>}, {transform_indices = @transform_3, window_bounds = array<i64: 1, 32, 128>}, {transform_indices = @transform_4, window_bounds = array<i64: 1, 32, 128>}, {transform_indices = @transform_5, window_bounds = array<i64: 1, 32, 128>}, {transform_indices = @transform_6, window_bounds = array<i64: 1, 1, 9, 128>}]} {
    %c0 = arith.constant 0 : index
    %c0_0 = arith.constant 0 : index
    %c0_1 = arith.constant 0 : index
    %0 = vector.load %arg2[%c0, %c0_0, %c0_1] : memref<1x32x128xf32, #tpu.memory_space<vmem>>, vector<1x32x128xf32>
    %1 = vector.shape_cast %0 : vector<1x32x128xf32> to vector<32x128xf32>
    %2 = arith.cmpf one, %1, %1 : vector<32x128xf32>
    %cst = arith.constant 0.000000e+00 : f32
    %3 = vector.broadcast %cst : f32 to vector<32x128xf32>
    %4 = arith.select %2, %3, %1 : vector<32x128xi1>, vector<32x128xf32>
    %c0_2 = arith.constant 0 : index
    %c0_3 = arith.constant 0 : index
    %c0_4 = arith.constant 0 : index
    %5 = vector.load %arg3[%c0_2, %c0_3, %c0_4] : memref<1x32x128xf32, #tpu.memory_space<vmem>>, vector<1x32x128xf32>
    %6 = vector.shape_cast %5 : vector<1x32x128xf32> to vector<32x128xf32>
    %cst_5 = arith.constant 0.000000e+00 : f32
    %7 = vector.broadcast %cst_5 : f32 to vector<32x128xf32>
    %8 = arith.cmpf ogt, %6, %7 : vector<32x128xf32>
    %9 = arith.extui %8 : vector<32x128xi1> to vector<32x128xi32>
    %10 = arith.sitofp %9 : vector<32x128xi32> to vector<32x128xf32>
    %11 = tpu.iota {dimensions = array<i32: 0>} : vector<32x1xi32>
    %12 = tpu.iota {dimensions = array<i32: 1>} : vector<1x128xi32>
    %c16_i32 = arith.constant 16 : i32
    %13 = vector.broadcast %c16_i32 : i32 to vector<1x128xi32>
    %14 = arith.cmpi slt, %12, %13 : vector<1x128xi32>
    %c32_i32 = arith.constant 32 : i32
    %15 = arith.muli %arg1, %c32_i32 : i32
    %16 = vector.broadcast %15 : i32 to vector<32x1xi32>
    %17 = arith.addi %16, %11 : vector<32x1xi32>
    %c16_i32_6 = arith.constant 16 : i32
    %18 = vector.broadcast %c16_i32_6 : i32 to vector<32x1xi32>
    %19 = arith.cmpi slt, %17, %18 : vector<32x1xi32>
    %20 = vector.broadcast %19 : vector<32x1xi1> to vector<32x128xi1>
    %21 = vector.broadcast %14 : vector<1x128xi1> to vector<32x128xi1>
    %22 = arith.andi %20, %21 : vector<32x128xi1>
    %23 = arith.extui %22 : vector<32x128xi1> to vector<32x128xi32>
    %24 = arith.sitofp %23 : vector<32x128xi32> to vector<32x128xf32>
    %25 = math.absf %4 : vector<32x128xf32>
    %cst_7 = arith.constant 0.000000e+00 : f32
    %26 = vector.broadcast %cst_7 : f32 to vector<32x128xf32>
    %27 = arith.subf %26, %25 : vector<32x128xf32>
    %28 = math.exp %27 : vector<32x128xf32>
    %cst_8 = arith.constant 1.000000e+00 : f32
    %29 = vector.broadcast %cst_8 : f32 to vector<32x128xf32>
    %30 = arith.addf %29, %28 : vector<32x128xf32>
    %31 = tpu.reciprocal %30 {approx = true} : vector<32x128xf32> -> vector<32x128xf32>
    %32 = arith.mulf %30, %31 : vector<32x128xf32>
    %cst_9 = arith.constant 2.000000e+00 : f32
    %33 = vector.broadcast %cst_9 : f32 to vector<32x128xf32>
    %34 = arith.subf %33, %32 : vector<32x128xf32>
    %35 = arith.mulf %31, %34 : vector<32x128xf32>
    %36 = math.log %30 : vector<32x128xf32>
    %cst_10 = arith.constant 1.000000e+00 : f32
    %37 = vector.broadcast %cst_10 : f32 to vector<32x128xf32>
    %38 = arith.subf %30, %37 : vector<32x128xf32>
    %39 = arith.subf %38, %28 : vector<32x128xf32>
    %40 = arith.mulf %39, %35 : vector<32x128xf32>
    %41 = arith.subf %36, %40 : vector<32x128xf32>
    %cst_11 = arith.constant 0.000000e+00 : f32
    %42 = vector.broadcast %cst_11 : f32 to vector<32x128xf32>
    %43 = arith.maximumf %4, %42 : vector<32x128xf32>
    %44 = arith.mulf %4, %10 : vector<32x128xf32>
    %45 = arith.subf %43, %44 : vector<32x128xf32>
    %46 = arith.addf %45, %41 : vector<32x128xf32>
    %cst_12 = arith.constant 0.000000e+00 : f32
    %47 = vector.broadcast %cst_12 : f32 to vector<32x128xf32>
    %48 = arith.cmpf oge, %4, %47 : vector<32x128xf32>
    %49 = arith.mulf %28, %35 : vector<32x128xf32>
    %50 = arith.select %48, %35, %49 : vector<32x128xi1>, vector<32x128xf32>
    %51 = arith.mulf %46, %24 : vector<32x128xf32>
    %52 = arith.mulf %50, %24 : vector<32x128xf32>
    %c0_i32 = arith.constant 0 : i32
    %53 = arith.cmpi sgt, %arg1, %c0_i32 : i32
    %54 = arith.extui %53 : i1 to i32
    %55 = arith.sitofp %54 : i32 to f32
    %c0_i32_13 = arith.constant 0 : i32
    %56 = arith.cmpi slt, %arg1, %c0_i32_13 : i32
    %57 = arith.extui %56 : i1 to i32
    %58 = arith.sitofp %57 : i32 to f32
    %c0_14 = arith.constant 0 : index
    %c0_15 = arith.constant 0 : index
    %c0_16 = arith.constant 0 : index
    %59 = vector.load %arg4[%c0_14, %c0_15, %c0_16] : memref<1x32x128xf32, #tpu.memory_space<vmem>>, vector<1x32x128xf32>
    %60 = vector.shape_cast %59 : vector<1x32x128xf32> to vector<32x128xf32>
    %61 = vector.extract_strided_slice %60 {offsets = [31, 0], sizes = [1, 128], strides = [1, 1]} : vector<32x128xf32> to vector<1x128xf32>
    %62 = arith.cmpf one, %61, %61 : vector<1x128xf32>
    %cst_17 = arith.constant 0.000000e+00 : f32
    %63 = vector.broadcast %cst_17 : f32 to vector<1x128xf32>
    %64 = arith.select %62, %63, %61 : vector<1x128xi1>, vector<1x128xf32>
    %65 = math.absf %64 : vector<1x128xf32>
    %cst_18 = arith.constant 0.000000e+00 : f32
    %66 = vector.broadcast %cst_18 : f32 to vector<1x128xf32>
    %67 = arith.subf %66, %65 : vector<1x128xf32>
    %68 = math.exp %67 : vector<1x128xf32>
    %cst_19 = arith.constant 1.000000e+00 : f32
    %69 = vector.broadcast %cst_19 : f32 to vector<1x128xf32>
    %70 = arith.addf %69, %68 : vector<1x128xf32>
    %71 = tpu.reciprocal %70 {approx = true} : vector<1x128xf32> -> vector<1x128xf32>
    %72 = arith.mulf %70, %71 : vector<1x128xf32>
    %cst_20 = arith.constant 2.000000e+00 : f32
    %73 = vector.broadcast %cst_20 : f32 to vector<1x128xf32>
    %74 = arith.subf %73, %72 : vector<1x128xf32>
    %75 = arith.mulf %71, %74 : vector<1x128xf32>
    %cst_21 = arith.constant 0.000000e+00 : f32
    %76 = vector.broadcast %cst_21 : f32 to vector<1x128xf32>
    %77 = arith.cmpf oge, %64, %76 : vector<1x128xf32>
    %78 = arith.mulf %68, %75 : vector<1x128xf32>
    %79 = arith.select %77, %75, %78 : vector<1x128xi1>, vector<1x128xf32>
    %80 = vector.broadcast %55 : f32 to vector<1x128xf32>
    %81 = arith.mulf %79, %80 : vector<1x128xf32>
    %c0_22 = arith.constant 0 : index
    %c0_23 = arith.constant 0 : index
    %c0_24 = arith.constant 0 : index
    %82 = vector.load %arg5[%c0_22, %c0_23, %c0_24] : memref<1x32x128xf32, #tpu.memory_space<vmem>>, vector<1x32x128xf32>
    %83 = vector.shape_cast %82 : vector<1x32x128xf32> to vector<32x128xf32>
    %84 = vector.extract_strided_slice %83 {offsets = [0, 0], sizes = [1, 128], strides = [1, 1]} : vector<32x128xf32> to vector<1x128xf32>
    %85 = arith.cmpf one, %84, %84 : vector<1x128xf32>
    %cst_25 = arith.constant 0.000000e+00 : f32
    %86 = vector.broadcast %cst_25 : f32 to vector<1x128xf32>
    %87 = arith.select %85, %86, %84 : vector<1x128xi1>, vector<1x128xf32>
    %88 = math.absf %87 : vector<1x128xf32>
    %cst_26 = arith.constant 0.000000e+00 : f32
    %89 = vector.broadcast %cst_26 : f32 to vector<1x128xf32>
    %90 = arith.subf %89, %88 : vector<1x128xf32>
    %91 = math.exp %90 : vector<1x128xf32>
    %cst_27 = arith.constant 1.000000e+00 : f32
    %92 = vector.broadcast %cst_27 : f32 to vector<1x128xf32>
    %93 = arith.addf %92, %91 : vector<1x128xf32>
    %94 = tpu.reciprocal %93 {approx = true} : vector<1x128xf32> -> vector<1x128xf32>
    %95 = arith.mulf %93, %94 : vector<1x128xf32>
    %cst_28 = arith.constant 2.000000e+00 : f32
    %96 = vector.broadcast %cst_28 : f32 to vector<1x128xf32>
    %97 = arith.subf %96, %95 : vector<1x128xf32>
    %98 = arith.mulf %94, %97 : vector<1x128xf32>
    %cst_29 = arith.constant 0.000000e+00 : f32
    %99 = vector.broadcast %cst_29 : f32 to vector<1x128xf32>
    %100 = arith.cmpf oge, %87, %99 : vector<1x128xf32>
    %101 = arith.mulf %91, %98 : vector<1x128xf32>
    %102 = arith.select %100, %98, %101 : vector<1x128xi1>, vector<1x128xf32>
    %103 = vector.broadcast %58 : f32 to vector<1x128xf32>
    %104 = arith.mulf %102, %103 : vector<1x128xf32>
    %c0_30 = arith.constant 0 : index
    %c0_31 = arith.constant 0 : index
    %c0_32 = arith.constant 0 : index
    %105 = vector.load %arg6[%c0_30, %c0_31, %c0_32] : memref<1x32x128xf32, #tpu.memory_space<vmem>>, vector<1x32x128xf32>
    %106 = vector.shape_cast %105 : vector<1x32x128xf32> to vector<32x128xf32>
    %107 = vector.extract_strided_slice %106 {offsets = [31, 0], sizes = [1, 128], strides = [1, 1]} : vector<32x128xf32> to vector<1x128xf32>
    %cst_33 = arith.constant 0.000000e+00 : f32
    %108 = vector.broadcast %cst_33 : f32 to vector<1x128xf32>
    %109 = arith.cmpf ogt, %107, %108 : vector<1x128xf32>
    %110 = arith.extui %109 : vector<1x128xi1> to vector<1x128xi32>
    %111 = arith.sitofp %110 : vector<1x128xi32> to vector<1x128xf32>
    %112 = vector.broadcast %55 : f32 to vector<1x128xf32>
    %113 = arith.mulf %111, %112 : vector<1x128xf32>
    %c0_34 = arith.constant 0 : index
    %c0_35 = arith.constant 0 : index
    %c0_36 = arith.constant 0 : index
    %114 = vector.load %arg7[%c0_34, %c0_35, %c0_36] : memref<1x32x128xf32, #tpu.memory_space<vmem>>, vector<1x32x128xf32>
    %115 = vector.shape_cast %114 : vector<1x32x128xf32> to vector<32x128xf32>
    %116 = vector.extract_strided_slice %115 {offsets = [0, 0], sizes = [1, 128], strides = [1, 1]} : vector<32x128xf32> to vector<1x128xf32>
    %cst_37 = arith.constant 0.000000e+00 : f32
    %117 = vector.broadcast %cst_37 : f32 to vector<1x128xf32>
    %118 = arith.cmpf ogt, %116, %117 : vector<1x128xf32>
    %119 = arith.extui %118 : vector<1x128xi1> to vector<1x128xi32>
    %120 = arith.sitofp %119 : vector<1x128xi32> to vector<1x128xf32>
    %121 = vector.broadcast %58 : f32 to vector<1x128xf32>
    %122 = arith.mulf %120, %121 : vector<1x128xf32>
    %123 = arith.extui %14 : vector<1x128xi1> to vector<1x128xi32>
    %124 = arith.sitofp %123 : vector<1x128xi32> to vector<1x128xf32>
    %125 = arith.mulf %81, %124 : vector<1x128xf32>
    %126 = arith.mulf %104, %124 : vector<1x128xf32>
    %c0_i32_38 = arith.constant 0 : i32
    %127 = vector.broadcast %c0_i32_38 : i32 to vector<32x1xi32>
    %128 = arith.cmpi eq, %11, %127 : vector<32x1xi32>
    %c31_i32 = arith.constant 31 : i32
    %129 = vector.broadcast %c31_i32 : i32 to vector<32x1xi32>
    %130 = arith.cmpi eq, %11, %129 : vector<32x1xi32>
    %c1_i32 = arith.constant 1 : i32
    %131 = tpu.dynamic_rotate %52 by %c1_i32 dim 0 : vector<32x128xf32>, i32 -> vector<32x128xf32>
    %132 = vector.shape_cast %128 : vector<32x1xi1> to vector<32x1xi1>
    %133 = vector.broadcast %132 : vector<32x1xi1> to vector<32x128xi1>
    %134 = vector.shape_cast %125 : vector<1x128xf32> to vector<1x128xf32>
    %135 = vector.broadcast %134 : vector<1x128xf32> to vector<32x128xf32>
    %136 = arith.select %133, %135, %131 : vector<32x128xi1>, vector<32x128xf32>
    %cst_39 = arith.constant 2.000000e+00 : f32
    %137 = vector.broadcast %cst_39 : f32 to vector<32x128xf32>
    %138 = arith.mulf %137, %52 : vector<32x128xf32>
    %139 = arith.addf %136, %138 : vector<32x128xf32>
    %c31_i32_40 = arith.constant 31 : i32
    %140 = tpu.dynamic_rotate %52 by %c31_i32_40 dim 0 : vector<32x128xf32>, i32 -> vector<32x128xf32>
    %141 = vector.shape_cast %130 : vector<32x1xi1> to vector<32x1xi1>
    %142 = vector.broadcast %141 : vector<32x1xi1> to vector<32x128xi1>
    %143 = vector.shape_cast %126 : vector<1x128xf32> to vector<1x128xf32>
    %144 = vector.broadcast %143 : vector<1x128xf32> to vector<32x128xf32>
    %145 = arith.select %142, %144, %140 : vector<32x128xi1>, vector<32x128xf32>
    %146 = arith.addf %139, %145 : vector<32x128xf32>
    %c127_i32 = arith.constant 127 : i32
    %147 = tpu.dynamic_rotate %146 by %c127_i32 dim 1 : vector<32x128xf32>, i32 -> vector<32x128xf32>
    %c1_i32_41 = arith.constant 1 : i32
    %148 = tpu.dynamic_rotate %146 by %c1_i32_41 dim 1 : vector<32x128xf32>, i32 -> vector<32x128xf32>
    %149 = arith.subf %147, %148 : vector<32x128xf32>
    %c1_i32_42 = arith.constant 1 : i32
    %150 = tpu.dynamic_rotate %52 by %c1_i32_42 dim 1 : vector<32x128xf32>, i32 -> vector<32x128xf32>
    %cst_43 = arith.constant 2.000000e+00 : f32
    %151 = vector.broadcast %cst_43 : f32 to vector<32x128xf32>
    %152 = arith.mulf %151, %52 : vector<32x128xf32>
    %153 = arith.addf %150, %152 : vector<32x128xf32>
    %c127_i32_44 = arith.constant 127 : i32
    %154 = tpu.dynamic_rotate %52 by %c127_i32_44 dim 1 : vector<32x128xf32>, i32 -> vector<32x128xf32>
    %155 = arith.addf %153, %154 : vector<32x128xf32>
    %c1_i32_45 = arith.constant 1 : i32
    %156 = tpu.dynamic_rotate %125 by %c1_i32_45 dim 1 : vector<1x128xf32>, i32 -> vector<1x128xf32>
    %cst_46 = arith.constant 2.000000e+00 : f32
    %157 = vector.broadcast %cst_46 : f32 to vector<1x128xf32>
    %158 = arith.mulf %157, %125 : vector<1x128xf32>
    %159 = arith.addf %156, %158 : vector<1x128xf32>
    %c127_i32_47 = arith.constant 127 : i32
    %160 = tpu.dynamic_rotate %125 by %c127_i32_47 dim 1 : vector<1x128xf32>, i32 -> vector<1x128xf32>
    %161 = arith.addf %159, %160 : vector<1x128xf32>
    %c1_i32_48 = arith.constant 1 : i32
    %162 = tpu.dynamic_rotate %126 by %c1_i32_48 dim 1 : vector<1x128xf32>, i32 -> vector<1x128xf32>
    %cst_49 = arith.constant 2.000000e+00 : f32
    %163 = vector.broadcast %cst_49 : f32 to vector<1x128xf32>
    %164 = arith.mulf %163, %126 : vector<1x128xf32>
    %165 = arith.addf %162, %164 : vector<1x128xf32>
    %c127_i32_50 = arith.constant 127 : i32
    %166 = tpu.dynamic_rotate %126 by %c127_i32_50 dim 1 : vector<1x128xf32>, i32 -> vector<1x128xf32>
    %167 = arith.addf %165, %166 : vector<1x128xf32>
    %c31_i32_51 = arith.constant 31 : i32
    %168 = tpu.dynamic_rotate %155 by %c31_i32_51 dim 0 : vector<32x128xf32>, i32 -> vector<32x128xf32>
    %169 = vector.shape_cast %130 : vector<32x1xi1> to vector<32x1xi1>
    %170 = vector.broadcast %169 : vector<32x1xi1> to vector<32x128xi1>
    %171 = vector.shape_cast %167 : vector<1x128xf32> to vector<1x128xf32>
    %172 = vector.broadcast %171 : vector<1x128xf32> to vector<32x128xf32>
    %173 = arith.select %170, %172, %168 : vector<32x128xi1>, vector<32x128xf32>
    %c1_i32_52 = arith.constant 1 : i32
    %174 = tpu.dynamic_rotate %155 by %c1_i32_52 dim 0 : vector<32x128xf32>, i32 -> vector<32x128xf32>
    %175 = vector.shape_cast %128 : vector<32x1xi1> to vector<32x1xi1>
    %176 = vector.broadcast %175 : vector<32x1xi1> to vector<32x128xi1>
    %177 = vector.shape_cast %161 : vector<1x128xf32> to vector<1x128xf32>
    %178 = vector.broadcast %177 : vector<1x128xf32> to vector<32x128xf32>
    %179 = arith.select %176, %178, %174 : vector<32x128xi1>, vector<32x128xf32>
    %180 = arith.subf %173, %179 : vector<32x128xf32>
    %181 = arith.mulf %149, %149 : vector<32x128xf32>
    %182 = arith.mulf %180, %180 : vector<32x128xf32>
    %183 = arith.addf %181, %182 : vector<32x128xf32>
    %184 = math.sqrt %183 : vector<32x128xf32>
    %c1_i32_53 = arith.constant 1 : i32
    %185 = tpu.dynamic_rotate %10 by %c1_i32_53 dim 0 : vector<32x128xf32>, i32 -> vector<32x128xf32>
    %186 = vector.shape_cast %128 : vector<32x1xi1> to vector<32x1xi1>
    %187 = vector.broadcast %186 : vector<32x1xi1> to vector<32x128xi1>
    %188 = vector.shape_cast %113 : vector<1x128xf32> to vector<1x128xf32>
    %189 = vector.broadcast %188 : vector<1x128xf32> to vector<32x128xf32>
    %190 = arith.select %187, %189, %185 : vector<32x128xi1>, vector<32x128xf32>
    %cst_54 = arith.constant 2.000000e+00 : f32
    %191 = vector.broadcast %cst_54 : f32 to vector<32x128xf32>
    %192 = arith.mulf %191, %10 : vector<32x128xf32>
    %193 = arith.addf %190, %192 : vector<32x128xf32>
    %c31_i32_55 = arith.constant 31 : i32
    %194 = tpu.dynamic_rotate %10 by %c31_i32_55 dim 0 : vector<32x128xf32>, i32 -> vector<32x128xf32>
    %195 = vector.shape_cast %130 : vector<32x1xi1> to vector<32x1xi1>
    %196 = vector.broadcast %195 : vector<32x1xi1> to vector<32x128xi1>
    %197 = vector.shape_cast %122 : vector<1x128xf32> to vector<1x128xf32>
    %198 = vector.broadcast %197 : vector<1x128xf32> to vector<32x128xf32>
    %199 = arith.select %196, %198, %194 : vector<32x128xi1>, vector<32x128xf32>
    %200 = arith.addf %193, %199 : vector<32x128xf32>
    %c127_i32_56 = arith.constant 127 : i32
    %201 = tpu.dynamic_rotate %200 by %c127_i32_56 dim 1 : vector<32x128xf32>, i32 -> vector<32x128xf32>
    %c1_i32_57 = arith.constant 1 : i32
    %202 = tpu.dynamic_rotate %200 by %c1_i32_57 dim 1 : vector<32x128xf32>, i32 -> vector<32x128xf32>
    %203 = arith.subf %201, %202 : vector<32x128xf32>
    %c1_i32_58 = arith.constant 1 : i32
    %204 = tpu.dynamic_rotate %10 by %c1_i32_58 dim 1 : vector<32x128xf32>, i32 -> vector<32x128xf32>
    %cst_59 = arith.constant 2.000000e+00 : f32
    %205 = vector.broadcast %cst_59 : f32 to vector<32x128xf32>
    %206 = arith.mulf %205, %10 : vector<32x128xf32>
    %207 = arith.addf %204, %206 : vector<32x128xf32>
    %c127_i32_60 = arith.constant 127 : i32
    %208 = tpu.dynamic_rotate %10 by %c127_i32_60 dim 1 : vector<32x128xf32>, i32 -> vector<32x128xf32>
    %209 = arith.addf %207, %208 : vector<32x128xf32>
    %c1_i32_61 = arith.constant 1 : i32
    %210 = tpu.dynamic_rotate %113 by %c1_i32_61 dim 1 : vector<1x128xf32>, i32 -> vector<1x128xf32>
    %cst_62 = arith.constant 2.000000e+00 : f32
    %211 = vector.broadcast %cst_62 : f32 to vector<1x128xf32>
    %212 = arith.mulf %211, %113 : vector<1x128xf32>
    %213 = arith.addf %210, %212 : vector<1x128xf32>
    %c127_i32_63 = arith.constant 127 : i32
    %214 = tpu.dynamic_rotate %113 by %c127_i32_63 dim 1 : vector<1x128xf32>, i32 -> vector<1x128xf32>
    %215 = arith.addf %213, %214 : vector<1x128xf32>
    %c1_i32_64 = arith.constant 1 : i32
    %216 = tpu.dynamic_rotate %122 by %c1_i32_64 dim 1 : vector<1x128xf32>, i32 -> vector<1x128xf32>
    %cst_65 = arith.constant 2.000000e+00 : f32
    %217 = vector.broadcast %cst_65 : f32 to vector<1x128xf32>
    %218 = arith.mulf %217, %122 : vector<1x128xf32>
    %219 = arith.addf %216, %218 : vector<1x128xf32>
    %c127_i32_66 = arith.constant 127 : i32
    %220 = tpu.dynamic_rotate %122 by %c127_i32_66 dim 1 : vector<1x128xf32>, i32 -> vector<1x128xf32>
    %221 = arith.addf %219, %220 : vector<1x128xf32>
    %c31_i32_67 = arith.constant 31 : i32
    %222 = tpu.dynamic_rotate %209 by %c31_i32_67 dim 0 : vector<32x128xf32>, i32 -> vector<32x128xf32>
    %223 = vector.shape_cast %130 : vector<32x1xi1> to vector<32x1xi1>
    %224 = vector.broadcast %223 : vector<32x1xi1> to vector<32x128xi1>
    %225 = vector.shape_cast %221 : vector<1x128xf32> to vector<1x128xf32>
    %226 = vector.broadcast %225 : vector<1x128xf32> to vector<32x128xf32>
    %227 = arith.select %224, %226, %222 : vector<32x128xi1>, vector<32x128xf32>
    %c1_i32_68 = arith.constant 1 : i32
    %228 = tpu.dynamic_rotate %209 by %c1_i32_68 dim 0 : vector<32x128xf32>, i32 -> vector<32x128xf32>
    %229 = vector.shape_cast %128 : vector<32x1xi1> to vector<32x1xi1>
    %230 = vector.broadcast %229 : vector<32x1xi1> to vector<32x128xi1>
    %231 = vector.shape_cast %215 : vector<1x128xf32> to vector<1x128xf32>
    %232 = vector.broadcast %231 : vector<1x128xf32> to vector<32x128xf32>
    %233 = arith.select %230, %232, %228 : vector<32x128xi1>, vector<32x128xf32>
    %234 = arith.subf %227, %233 : vector<32x128xf32>
    %235 = arith.mulf %203, %203 : vector<32x128xf32>
    %236 = arith.mulf %234, %234 : vector<32x128xf32>
    %237 = arith.addf %235, %236 : vector<32x128xf32>
    %238 = math.sqrt %237 : vector<32x128xf32>
    %239 = arith.mulf %184, %24 : vector<32x128xf32>
    %240 = arith.mulf %238, %24 : vector<32x128xf32>
    %cst_69 = arith.constant dense<0.000000e+00> : vector<128xf32>
    %241 = vector.multi_reduction <add>, %51, %cst_69 [0] : vector<32x128xf32> to vector<128xf32>
    %242 = vector.shape_cast %241 : vector<128xf32> to vector<1x128xf32>
    %243 = arith.mulf %52, %10 : vector<32x128xf32>
    %cst_70 = arith.constant dense<0.000000e+00> : vector<128xf32>
    %244 = vector.multi_reduction <add>, %243, %cst_70 [0] : vector<32x128xf32> to vector<128xf32>
    %245 = vector.shape_cast %244 : vector<128xf32> to vector<1x128xf32>
    %cst_71 = arith.constant dense<0.000000e+00> : vector<128xf32>
    %246 = vector.multi_reduction <add>, %52, %cst_71 [0] : vector<32x128xf32> to vector<128xf32>
    %247 = vector.shape_cast %246 : vector<128xf32> to vector<1x128xf32>
    %cst_72 = arith.constant dense<0.000000e+00> : vector<128xf32>
    %248 = vector.multi_reduction <add>, %10, %cst_72 [0] : vector<32x128xf32> to vector<128xf32>
    %249 = vector.shape_cast %248 : vector<128xf32> to vector<1x128xf32>
    %250 = arith.mulf %239, %240 : vector<32x128xf32>
    %cst_73 = arith.constant dense<0.000000e+00> : vector<128xf32>
    %251 = vector.multi_reduction <add>, %250, %cst_73 [0] : vector<32x128xf32> to vector<128xf32>
    %252 = vector.shape_cast %251 : vector<128xf32> to vector<1x128xf32>
    %cst_74 = arith.constant dense<0.000000e+00> : vector<128xf32>
    %253 = vector.multi_reduction <add>, %239, %cst_74 [0] : vector<32x128xf32> to vector<128xf32>
    %254 = vector.shape_cast %253 : vector<128xf32> to vector<1x128xf32>
    %cst_75 = arith.constant dense<0.000000e+00> : vector<128xf32>
    %255 = vector.multi_reduction <add>, %240, %cst_75 [0] : vector<32x128xf32> to vector<128xf32>
    %256 = vector.shape_cast %255 : vector<128xf32> to vector<1x128xf32>
    %cst_76 = arith.constant dense<0xFF800000> : vector<128xf32>
    %257 = vector.multi_reduction <maximumf>, %239, %cst_76 [0] : vector<32x128xf32> to vector<128xf32>
    %258 = vector.shape_cast %257 : vector<128xf32> to vector<1x128xf32>
    %cst_77 = arith.constant dense<0xFF800000> : vector<128xf32>
    %259 = vector.multi_reduction <maximumf>, %240, %cst_77 [0] : vector<32x128xf32> to vector<128xf32>
    %260 = vector.shape_cast %259 : vector<128xf32> to vector<1x128xf32>
    %c0_78 = arith.constant 0 : index
    %c0_79 = arith.constant 0 : index
    %c0_80 = arith.constant 0 : index
    %c0_81 = arith.constant 0 : index
    %261 = vector.load %arg8[%c0_78, %c0_79, %c0_80, %c0_81] : memref<1x1x9x128xf32, #tpu.memory_space<vmem>>, vector<1x1x1x128xf32>
    %262 = vector.shape_cast %261 : vector<1x1x1x128xf32> to vector<1x128xf32>
    %263 = vector.shape_cast %242 : vector<1x128xf32> to vector<1x1x1x128xf32>
    tpu.vector_store %arg8[%c0_78, %c0_79, %c0_80, %c0_81], %263 {strides = array<i32>} : memref<1x1x9x128xf32, #tpu.memory_space<vmem>>, vector<1x1x1x128xf32>,
    %c0_82 = arith.constant 0 : index
    %c0_83 = arith.constant 0 : index
    %c1 = arith.constant 1 : index
    %c0_84 = arith.constant 0 : index
    %264 = vector.load %arg8[%c0_82, %c0_83, %c1, %c0_84] : memref<1x1x9x128xf32, #tpu.memory_space<vmem>>, vector<1x1x1x128xf32>
    %265 = vector.shape_cast %264 : vector<1x1x1x128xf32> to vector<1x128xf32>
    %266 = vector.shape_cast %245 : vector<1x128xf32> to vector<1x1x1x128xf32>
    tpu.vector_store %arg8[%c0_82, %c0_83, %c1, %c0_84], %266 {strides = array<i32>} : memref<1x1x9x128xf32, #tpu.memory_space<vmem>>, vector<1x1x1x128xf32>,
    %c0_85 = arith.constant 0 : index
    %c0_86 = arith.constant 0 : index
    %c2 = arith.constant 2 : index
    %c0_87 = arith.constant 0 : index
    %267 = vector.load %arg8[%c0_85, %c0_86, %c2, %c0_87] : memref<1x1x9x128xf32, #tpu.memory_space<vmem>>, vector<1x1x1x128xf32>
    %268 = vector.shape_cast %267 : vector<1x1x1x128xf32> to vector<1x128xf32>
    %269 = vector.shape_cast %247 : vector<1x128xf32> to vector<1x1x1x128xf32>
    tpu.vector_store %arg8[%c0_85, %c0_86, %c2, %c0_87], %269 {strides = array<i32>} : memref<1x1x9x128xf32, #tpu.memory_space<vmem>>, vector<1x1x1x128xf32>,
    %c0_88 = arith.constant 0 : index
    %c0_89 = arith.constant 0 : index
    %c3 = arith.constant 3 : index
    %c0_90 = arith.constant 0 : index
    %270 = vector.load %arg8[%c0_88, %c0_89, %c3, %c0_90] : memref<1x1x9x128xf32, #tpu.memory_space<vmem>>, vector<1x1x1x128xf32>
    %271 = vector.shape_cast %270 : vector<1x1x1x128xf32> to vector<1x128xf32>
    %272 = vector.shape_cast %249 : vector<1x128xf32> to vector<1x1x1x128xf32>
    tpu.vector_store %arg8[%c0_88, %c0_89, %c3, %c0_90], %272 {strides = array<i32>} : memref<1x1x9x128xf32, #tpu.memory_space<vmem>>, vector<1x1x1x128xf32>,
    %c0_91 = arith.constant 0 : index
    %c0_92 = arith.constant 0 : index
    %c4 = arith.constant 4 : index
    %c0_93 = arith.constant 0 : index
    %273 = vector.load %arg8[%c0_91, %c0_92, %c4, %c0_93] : memref<1x1x9x128xf32, #tpu.memory_space<vmem>>, vector<1x1x1x128xf32>
    %274 = vector.shape_cast %273 : vector<1x1x1x128xf32> to vector<1x128xf32>
    %275 = vector.shape_cast %252 : vector<1x128xf32> to vector<1x1x1x128xf32>
    tpu.vector_store %arg8[%c0_91, %c0_92, %c4, %c0_93], %275 {strides = array<i32>} : memref<1x1x9x128xf32, #tpu.memory_space<vmem>>, vector<1x1x1x128xf32>,
    %c0_94 = arith.constant 0 : index
    %c0_95 = arith.constant 0 : index
    %c5 = arith.constant 5 : index
    %c0_96 = arith.constant 0 : index
    %276 = vector.load %arg8[%c0_94, %c0_95, %c5, %c0_96] : memref<1x1x9x128xf32, #tpu.memory_space<vmem>>, vector<1x1x1x128xf32>
    %277 = vector.shape_cast %276 : vector<1x1x1x128xf32> to vector<1x128xf32>
    %278 = vector.shape_cast %254 : vector<1x128xf32> to vector<1x1x1x128xf32>
    tpu.vector_store %arg8[%c0_94, %c0_95, %c5, %c0_96], %278 {strides = array<i32>} : memref<1x1x9x128xf32, #tpu.memory_space<vmem>>, vector<1x1x1x128xf32>,
    %c0_97 = arith.constant 0 : index
    %c0_98 = arith.constant 0 : index
    %c6 = arith.constant 6 : index
    %c0_99 = arith.constant 0 : index
    %279 = vector.load %arg8[%c0_97, %c0_98, %c6, %c0_99] : memref<1x1x9x128xf32, #tpu.memory_space<vmem>>, vector<1x1x1x128xf32>
    %280 = vector.shape_cast %279 : vector<1x1x1x128xf32> to vector<1x128xf32>
    %281 = vector.shape_cast %256 : vector<1x128xf32> to vector<1x1x1x128xf32>
    tpu.vector_store %arg8[%c0_97, %c0_98, %c6, %c0_99], %281 {strides = array<i32>} : memref<1x1x9x128xf32, #tpu.memory_space<vmem>>, vector<1x1x1x128xf32>,
    %c0_100 = arith.constant 0 : index
    %c0_101 = arith.constant 0 : index
    %c7 = arith.constant 7 : index
    %c0_102 = arith.constant 0 : index
    %282 = vector.load %arg8[%c0_100, %c0_101, %c7, %c0_102] : memref<1x1x9x128xf32, #tpu.memory_space<vmem>>, vector<1x1x1x128xf32>
    %283 = vector.shape_cast %282 : vector<1x1x1x128xf32> to vector<1x128xf32>
    %284 = vector.shape_cast %258 : vector<1x128xf32> to vector<1x1x1x128xf32>
    tpu.vector_store %arg8[%c0_100, %c0_101, %c7, %c0_102], %284 {strides = array<i32>} : memref<1x1x9x128xf32, #tpu.memory_space<vmem>>, vector<1x1x1x128xf32>,
    %c0_103 = arith.constant 0 : index
    %c0_104 = arith.constant 0 : index
    %c8 = arith.constant 8 : index
    %c0_105 = arith.constant 0 : index
    %285 = vector.load %arg8[%c0_103, %c0_104, %c8, %c0_105] : memref<1x1x9x128xf32, #tpu.memory_space<vmem>>, vector<1x1x1x128xf32>
    %286 = vector.shape_cast %285 : vector<1x1x1x128xf32> to vector<1x128xf32>
    %287 = vector.shape_cast %260 : vector<1x128xf32> to vector<1x1x1x128xf32>
    tpu.vector_store %arg8[%c0_103, %c0_104, %c8, %c0_105], %287 {strides = array<i32>} : memref<1x1x9x128xf32, #tpu.memory_space<vmem>>, vector<1x1x1x128xf32>,
    return
  }
  func.func @transform_0(%arg0: i32, %arg1: i32) -> (i32, i32, i32) {
    %c0_i32 = arith.constant 0 : i32
    %c0_i32_0 = arith.constant 0 : i32
    return %arg0, %arg1, %c0_i32 : i32, i32, i32
  }
  func.func @transform_1(%arg0: i32, %arg1: i32) -> (i32, i32, i32) {
    %c0_i32 = arith.constant 0 : i32
    %c0_i32_0 = arith.constant 0 : i32
    return %arg0, %arg1, %c0_i32 : i32, i32, i32
  }
  func.func @transform_2(%arg0: i32, %arg1: i32) -> (i32, i32, i32) {
    %c1_i32 = arith.constant 1 : i32
    %0 = arith.muli %arg1, %c1_i32 : i32
    %c1_i32_0 = arith.constant 1 : i32
    %1 = arith.subi %0, %c1_i32_0 : i32
    %c0_i32 = arith.constant 0 : i32
    %2 = arith.maxsi %1, %c0_i32 : i32
    %c0_i32_1 = arith.constant 0 : i32
    %c0_i32_2 = arith.constant 0 : i32
    return %arg0, %2, %c0_i32_1 : i32, i32, i32
  }
  func.func @transform_3(%arg0: i32, %arg1: i32) -> (i32, i32, i32) {
    %c1_i32 = arith.constant 1 : i32
    %0 = arith.addi %arg1, %c1_i32 : i32
    %c1_i32_0 = arith.constant 1 : i32
    %1 = arith.muli %0, %c1_i32_0 : i32
    %c0_i32 = arith.constant 0 : i32
    %2 = arith.minsi %1, %c0_i32 : i32
    %c0_i32_1 = arith.constant 0 : i32
    %c0_i32_2 = arith.constant 0 : i32
    return %arg0, %2, %c0_i32_1 : i32, i32, i32
  }
  func.func @transform_4(%arg0: i32, %arg1: i32) -> (i32, i32, i32) {
    %c1_i32 = arith.constant 1 : i32
    %0 = arith.muli %arg1, %c1_i32 : i32
    %c1_i32_0 = arith.constant 1 : i32
    %1 = arith.subi %0, %c1_i32_0 : i32
    %c0_i32 = arith.constant 0 : i32
    %2 = arith.maxsi %1, %c0_i32 : i32
    %c0_i32_1 = arith.constant 0 : i32
    %c0_i32_2 = arith.constant 0 : i32
    return %arg0, %2, %c0_i32_1 : i32, i32, i32
  }
  func.func @transform_5(%arg0: i32, %arg1: i32) -> (i32, i32, i32) {
    %c1_i32 = arith.constant 1 : i32
    %0 = arith.addi %arg1, %c1_i32 : i32
    %c1_i32_0 = arith.constant 1 : i32
    %1 = arith.muli %0, %c1_i32_0 : i32
    %c0_i32 = arith.constant 0 : i32
    %2 = arith.minsi %1, %c0_i32 : i32
    %c0_i32_1 = arith.constant 0 : i32
    %c0_i32_2 = arith.constant 0 : i32
    return %arg0, %2, %c0_i32_1 : i32, i32, i32
  }
  func.func @transform_6(%arg0: i32, %arg1: i32) -> (i32, i32, i32, i32) {
    %c0_i32 = arith.constant 0 : i32
    %c0_i32_0 = arith.constant 0 : i32
    %c0_i32_1 = arith.constant 0 : i32
    return %arg0, %arg1, %c0_i32, %c0_i32_0 : i32, i32, i32, i32
  }
}

</mosaic_0001>

<llo_original>
// kernel: tpu_custom_call.1
$region0: #{tpu_custom_call.1}
  #allocation0 [shape = 'u32[]', space=smem, size = 0x4, offset = 0x4, fixed_abs, tag = 'smem constant byte address 0x4 - core index']
  #allocation1 [shape = 'u32[144,128]{1,0:T(1,128)}', space=vmem, size = 0x12000, scoped, tag = 'internal scratch']
  %s0 = inlined_call_operand.hbm [shape: f32[2,32,128], index: 0, kind: input, shape index: {}]
  %s1 = inlined_call_operand.hbm [shape: f32[2,32,128], index: 1, kind: input, shape index: {}]
  %s2 = inlined_call_operand.hbm [shape: f32[2,32,128], index: 2, kind: input, shape index: {}]
  %s3 = inlined_call_operand.hbm [shape: f32[2,32,128], index: 3, kind: input, shape index: {}]
  %s4 = inlined_call_operand.hbm [shape: f32[2,32,128], index: 4, kind: input, shape index: {}]
  %s5 = inlined_call_operand.hbm [shape: f32[2,32,128], index: 5, kind: input, shape index: {}]
  %s6 = inlined_call_operand.vmem [shape: f32[2,1,9,128], index: 6, kind: output, shape index: {}]
  %s7 = sld [smem:[#allocation0]]
  $region81: #{tpu_custom_call.1} parent=0
    _
  %s9 = ssub.s32 1, %s7
  %s10 = scalar_select 0, %s9, %s7
  $region1: #{tpu_custom_call.1} parent=0
    #allocation2 [shape = 'u8[32768]{0}', space=vmem, size = 0x8000, scoped, tag = 'input window, operand 0']
    #allocation3 [shape = 's32[2]{0}', space=sflag, size = 0x8, scoped, tag = 'scoped memory for tpu_custom_call.1']
    #allocation4 [shape = 'u8[32768]{0}', space=vmem, size = 0x8000, scoped, tag = 'input window, operand 1']
    #allocation5 [shape = 's32[2]{0}', space=sflag, size = 0x8, scoped, tag = 'scoped memory for tpu_custom_call.1']
    #allocation6 [shape = 'u8[32768]{0}', space=vmem, size = 0x8000, scoped, tag = 'input window, operand 2']
    #allocation7 [shape = 'u8[32768]{0}', space=vmem, size = 0x8000, scoped, tag = 'input window, operand 3']
    #allocation8 [shape = 's32[2]{0}', space=sflag, size = 0x8, scoped, tag = 'scoped memory for tpu_custom_call.1']
    #allocation9 [shape = 'u8[32768]{0}', space=vmem, size = 0x8000, scoped, tag = 'input window, operand 4']
    #allocation10 [shape = 'u8[32768]{0}', space=vmem, size = 0x8000, scoped, tag = 'input window, operand 5']
    #allocation11 [shape = 's32[2]{0}', space=sflag, size = 0x8, scoped, tag = 'scoped memory for tpu_custom_call.1']
    %11 = vsyncpa [#allocation3], 0
    %s12 = scalar_lea.sflag [#allocation3], 1
    %13 = vsyncpa %s12, 0
    %14 = vsyncpa [#allocation5], 0
    %s15 = scalar_lea.sflag [#allocation5], 1
    %16 = vsyncpa %s15, 0
    %17 = vsyncpa [#allocation8], 0
    %s18 = scalar_lea.sflag [#allocation8], 1
    %19 = vsyncpa %s18, 0
    %20 = vsyncpa [#allocation11], 0
    %s21 = scalar_lea.sflag [#allocation11], 1
    %22 = vsyncpa %s21, 0
    loop: start=0, step=1, limit=4
    $region2: #{tpu_custom_call.1} parent=1 // loop_pre_header
      _
    $region3: #{tpu_custom_call.1} parent=1 // loop_header
      %s24 = sphi 0, %s28
      %p25 = scmp.ge.s32.totalorder %s24, 4
      %s31 = sphi 0, %s43
      %s32 = sphi 0, %s39
      %s33 = sphi 0, %s31
      %s34 = sphi 0, %s32
      %s35 = sphi 0, %s33
      %s36 = sphi 0, %s34
      %s48 = sphi 0, %s50
      %s51 = sphi 0, %s48
      %s52 = sphi 0, %s51
      %s68 = sphi 0, %s52
      %s76 = sphi 0, %s78
      %s79 = sphi 0, %s76
      %s80 = sphi 0, %s79
      %s96 = sphi 0, %s80
      %s110 = sphi 0, %s112
      %s113 = sphi 0, %s110
      %s114 = sphi 0, %s113
      %s130 = sphi 0, %s114
      %s144 = sphi 0, %s146
      %s147 = sphi 0, %s144
      %s148 = sphi 0, %s147
      %s164 = sphi 0, %s148
      %s178 = sphi 0, %s180
      %s181 = sphi 0, %s178
      %s182 = sphi 0, %s181
      %s198 = sphi 0, %s182
      %s212 = sphi 0, %s214
      %s215 = sphi 0, %s212
      %s216 = sphi 0, %s215
      %s232 = sphi 0, %s216
      %s240 = sphi 0, %s242
      %s243 = sphi 0, %s240
      %s244 = sphi 0, %s243
      %s260 = sphi 0, %s244
    $region4: #{tpu_custom_call.1} parent=1 // loop_header_branch
      %27 = sbr.rel (%p25) target = $region8
    $region5: #{tpu_custom_call.1} parent=1 // loop_body
      %s29 = ssub.s32 %s24, 1
      %s30 = ssub.s32 %s24, 2
      %s37 = sadd.s32 1, %s32
      %p38 = scmp.ge.s32.totalorder %s37, 1
      %s39 = scalar_select %p38, 0, %s37
      %s40 = sadd.s32 1, %s31
      %s41 = scalar_select %p38, %s40, %s31
      %p42 = scmp.ge.s32.totalorder %s41, 2
      %s43 = scalar_select %p42, 0, %s41
      %s44 = ssub.s32 %s31, %s43
      %s45 = ssub.s32 %s32, %s39
      %s46 = sor.u32 %s44, %s45
      %p47 = scmp.eq.s32.totalorder %s46, 0
      %s49 = sadd.s32 %s48, 1
      %s50 = scalar_select %p47, %s48, %s49
      %p53 = pneg %p47
      %p54 = scmp.eq.s32.totalorder %s24, 1
      %p55 = por %p53, %p54
      %p56 = scmp.ne.s32.totalorder %s48, %s51
      %p57 = scmp.eq.s32.totalorder %s24, 0
      %p58 = por %p56, %p57
      %p59 = scmp.ne.s32.totalorder %s48, %s51
      %p60 = scmp.eq.s32.totalorder %s29, 1
      %p61 = por %p59, %p60
      %p62 = scmp.ne.s32.totalorder %s51, %s52
      %p63 = scmp.eq.s32.totalorder %s29, 0
      %p64 = por %p62, %p63
      %p65 = scmp.ne.s32.totalorder %s51, %s52
      %p66 = scmp.eq.s32.totalorder %s30, 1
      %p67 = por %p65, %p66
      %p69 = scmp.ne.s32.totalorder %s52, %s68
      %p70 = scmp.eq.s32.totalorder %s30, 0
      %p71 = por %p69, %p70
      %s72 = ssub.s32 %s31, %s43
      %s73 = ssub.s32 %s32, %s39
      %s74 = sor.u32 %s72, %s73
      %p75 = scmp.eq.s32.totalorder %s74, 0
      %s77 = sadd.s32 %s76, 1
      %s78 = scalar_select %p75, %s76, %s77
      %p81 = pneg %p75
      %p82 = scmp.eq.s32.totalorder %s24, 1
      %p83 = por %p81, %p82
      %p84 = scmp.ne.s32.totalorder %s76, %s79
      %p85 = scmp.eq.s32.totalorder %s24, 0
      %p86 = por %p84, %p85
      %p87 = scmp.ne.s32.totalorder %s76, %s79
      %p88 = scmp.eq.s32.totalorder %s29, 1
      %p89 = por %p87, %p88
      %p90 = scmp.ne.s32.totalorder %s79, %s80
      %p91 = scmp.eq.s32.totalorder %s29, 0
      %p92 = por %p90, %p91
      %p93 = scmp.ne.s32.totalorder %s79, %s80
      %p94 = scmp.eq.s32.totalorder %s30, 1
      %p95 = por %p93, %p94
      %p97 = scmp.ne.s32.totalorder %s80, %s96
      %p98 = scmp.eq.s32.totalorder %s30, 0
      %p99 = por %p97, %p98
      %s100 = ssub.s32 %s32, 1
      %p101 = scmp.gt.s32.totalorder %s100, 0
      %s102 = scalar_select %p101, %s100, 0
      %s103 = ssub.s32 %s39, 1
      %p104 = scmp.gt.s32.totalorder %s103, 0
      %s105 = scalar_select %p104, %s103, 0
      %s106 = ssub.s32 %s31, %s43
      %s107 = ssub.s32 %s102, %s105
      %s108 = sor.u32 %s106, %s107
      %p109 = scmp.eq.s32.totalorder %s108, 0
      %s111 = sadd.s32 %s110, 1
      %s112 = scalar_select %p109, %s110, %s111
      %p115 = pneg %p109
      %p116 = scmp.eq.s32.totalorder %s24, 1
      %p117 = por %p115, %p116
      %p118 = scmp.ne.s32.totalorder %s110, %s113
      %p119 = scmp.eq.s32.totalorder %s24, 0
      %p120 = por %p118, %p119
      %p121 = scmp.ne.s32.totalorder %s110, %s113
      %p122 = scmp.eq.s32.totalorder %s29, 1
      %p123 = por %p121, %p122
      %p124 = scmp.ne.s32.totalorder %s113, %s114
      %p125 = scmp.eq.s32.totalorder %s29, 0
      %p126 = por %p124, %p125
      %p127 = scmp.ne.s32.totalorder %s113, %s114
      %p128 = scmp.eq.s32.totalorder %s30, 1
      %p129 = por %p127, %p128
      %p131 = scmp.ne.s32.totalorder %s114, %s130
      %p132 = scmp.eq.s32.totalorder %s30, 0
      %p133 = por %p131, %p132
      %s134 = sadd.s32 %s32, 1
      %p135 = scmp.lt.s32.totalorder %s134, 0
      %s136 = scalar_select %p135, %s134, 0
      %s137 = sadd.s32 %s39, 1
      %p138 = scmp.lt.s32.totalorder %s137, 0
      %s139 = scalar_select %p138, %s137, 0
      %s140 = ssub.s32 %s31, %s43
      %s141 = ssub.s32 %s136, %s139
      %s142 = sor.u32 %s140, %s141
      %p143 = scmp.eq.s32.totalorder %s142, 0
      %s145 = sadd.s32 %s144, 1
      %s146 = scalar_select %p143, %s144, %s145
      %p149 = pneg %p143
      %p150 = scmp.eq.s32.totalorder %s24, 1
      %p151 = por %p149, %p150
      %p152 = scmp.ne.s32.totalorder %s144, %s147
      %p153 = scmp.eq.s32.totalorder %s24, 0
      %p154 = por %p152, %p153
      %p155 = scmp.ne.s32.totalorder %s144, %s147
      %p156 = scmp.eq.s32.totalorder %s29, 1
      %p157 = por %p155, %p156
      %p158 = scmp.ne.s32.totalorder %s147, %s148
      %p159 = scmp.eq.s32.totalorder %s29, 0
      %p160 = por %p158, %p159
      %p161 = scmp.ne.s32.totalorder %s147, %s148
      %p162 = scmp.eq.s32.totalorder %s30, 1
      %p163 = por %p161, %p162
      %p165 = scmp.ne.s32.totalorder %s148, %s164
      %p166 = scmp.eq.s32.totalorder %s30, 0
      %p167 = por %p165, %p166
      %s168 = ssub.s32 %s32, 1
      %p169 = scmp.gt.s32.totalorder %s168, 0
      %s170 = scalar_select %p169, %s168, 0
      %s171 = ssub.s32 %s39, 1
      %p172 = scmp.gt.s32.totalorder %s171, 0
      %s173 = scalar_select %p172, %s171, 0
      %s174 = ssub.s32 %s31, %s43
      %s175 = ssub.s32 %s170, %s173
      %s176 = sor.u32 %s174, %s175
      %p177 = scmp.eq.s32.totalorder %s176, 0
      %s179 = sadd.s32 %s178, 1
      %s180 = scalar_select %p177, %s178, %s179
      %p183 = pneg %p177
      %p184 = scmp.eq.s32.totalorder %s24, 1
      %p185 = por %p183, %p184
      %p186 = scmp.ne.s32.totalorder %s178, %s181
      %p187 = scmp.eq.s32.totalorder %s24, 0
      %p188 = por %p186, %p187
      %p189 = scmp.ne.s32.totalorder %s178, %s181
      %p190 = scmp.eq.s32.totalorder %s29, 1
      %p191 = por %p189, %p190
      %p192 = scmp.ne.s32.totalorder %s181, %s182
      %p193 = scmp.eq.s32.totalorder %s29, 0
      %p194 = por %p192, %p193
      %p195 = scmp.ne.s32.totalorder %s181, %s182
      %p196 = scmp.eq.s32.totalorder %s30, 1
      %p197 = por %p195, %p196
      %p199 = scmp.ne.s32.totalorder %s182, %s198
      %p200 = scmp.eq.s32.totalorder %s30, 0
      %p201 = por %p199, %p200
      %s202 = sadd.s32 %s32, 1
      %p203 = scmp.lt.s32.totalorder %s202, 0
      %s204 = scalar_select %p203, %s202, 0
      %s205 = sadd.s32 %s39, 1
      %p206 = scmp.lt.s32.totalorder %s205, 0
      %s207 = scalar_select %p206, %s205, 0
      %s208 = ssub.s32 %s31, %s43
      %s209 = ssub.s32 %s204, %s207
      %s210 = sor.u32 %s208, %s209
      %p211 = scmp.eq.s32.totalorder %s210, 0
      %s213 = sadd.s32 %s212, 1
      %s214 = scalar_select %p211, %s212, %s213
      %p217 = pneg %p211
      %p218 = scmp.eq.s32.totalorder %s24, 1
      %p219 = por %p217, %p218
      %p220 = scmp.ne.s32.totalorder %s212, %s215
      %p221 = scmp.eq.s32.totalorder %s24, 0
      %p222 = por %p220, %p221
      %p223 = scmp.ne.s32.totalorder %s212, %s215
      %p224 = scmp.eq.s32.totalorder %s29, 1
      %p225 = por %p223, %p224
      %p226 = scmp.ne.s32.totalorder %s215, %s216
      %p227 = scmp.eq.s32.totalorder %s29, 0
      %p228 = por %p226, %p227
      %p229 = scmp.ne.s32.totalorder %s215, %s216
      %p230 = scmp.eq.s32.totalorder %s30, 1
      %p231 = por %p229, %p230
      %p233 = scmp.ne.s32.totalorder %s216, %s232
      %p234 = scmp.eq.s32.totalorder %s30, 0
      %p235 = por %p233, %p234
      %s236 = ssub.s32 %s31, %s43
      %s237 = ssub.s32 %s32, %s39
      %s238 = sor.u32 %s236, %s237
      %p239 = scmp.eq.s32.totalorder %s238, 0
      %s241 = sadd.s32 %s240, 1
      %s242 = scalar_select %p239, %s240, %s241
      %p245 = pneg %p239
      %p246 = scmp.eq.s32.totalorder %s24, 1
      %p247 = por %p245, %p246
      %p248 = scmp.ne.s32.totalorder %s240, %s243
      %p249 = scmp.eq.s32.totalorder %s24, 0
      %p250 = por %p248, %p249
      %p251 = scmp.ne.s32.totalorder %s240, %s243
      %p252 = scmp.eq.s32.totalorder %s29, 1
      %p253 = por %p251, %p252
      %p254 = scmp.ne.s32.totalorder %s243, %s244
      %p255 = scmp.eq.s32.totalorder %s29, 0
      %p256 = por %p254, %p255
      %p257 = scmp.ne.s32.totalorder %s243, %s244
      %p258 = scmp.eq.s32.totalorder %s30, 1
      %p259 = por %p257, %p258
      %p261 = scmp.ne.s32.totalorder %s244, %s260
      %p262 = scmp.eq.s32.totalorder %s30, 0
      %p263 = por %p261, %p262
      %p264 = scmp.le.s32.totalorder 1, %s24
      %p265 = scmp.lt.s32.totalorder %s24, 3
      %p266 = pnand %p264, %p265
      %p267 = pneg %p266
      // Predicated region
      $region9: #{tpu_custom_call.1} parent=5 // pred_check
        _
      $region10: #{tpu_custom_call.1} parent=5 // pred_check_branch
        %269 = sbr.rel (%p266) target = $region12
      $region11: #{tpu_custom_call.1} parent=5 // pred_region
        %s270 = ssub.s32 %s24, 1
      $region12: #{tpu_custom_call.1} parent=5 // pred_fallthru
        _
      %p271 = scmp.lt.s32.totalorder %s24, 2
      // Predicated region
      $region13: #{tpu_custom_call.1} parent=5 // pred_check
        %p272 = pneg %p271
      $region14: #{tpu_custom_call.1} parent=5 // pred_check_branch
        %274 = sbr.rel (%p272) target = $region16
      $region15: #{tpu_custom_call.1} parent=5 // pred_region
        // Predicated region
        $region17: #{tpu_custom_call.1} parent=15 // pred_check
          %p275 = pneg %p58
        $region18: #{tpu_custom_call.1} parent=15 // pred_check_branch
          %277 = sbr.rel (%p275) target = $region20
        $region19: #{tpu_custom_call.1} parent=15 // pred_region
          %s278 = sand.u32 %s48, 1
          %s279 = scalar_lea.sflag [#allocation3], %s278
          %s280 = sand.u32 %s48, 1
          %s281 = smul.addr %s280, 32
          %s282 = scalar_lea.vmem [#allocation2], %s281
          %s283 = smul.u32 4, %s32
          %s285 = ssub.s32 512, 512
          %286 = vsyncadd %s279, %s285
          %s287 = smul.addr %s31, 4
          %s288 = sadd.s32 %s283, %s287
          %s289 = smul.addr %s288, 128
          %s290 = scalar_lea.hbm %s0, %s289
          %s291 = sshll.u32 %s282, 4
          %s292 = int_to_ptr.vmem [resolvable:$true] %s291
          %297 = dma.hbm_to_vmem [thread:$0]  %s290, 512, %s292, %s279, 128, 128, 8
        $region20: #{tpu_custom_call.1} parent=15 // pred_fallthru
          _
        // Predicated region
        $region21: #{tpu_custom_call.1} parent=15 // pred_check
          %p298 = pneg %p86
        $region22: #{tpu_custom_call.1} parent=15 // pred_check_branch
          %300 = sbr.rel (%p298) target = $region24
        $region23: #{tpu_custom_call.1} parent=15 // pred_region
          %s301 = sand.u32 %s24, 1
          %s302 = scalar_lea.sflag [#allocation5], %s301
          %s303 = sand.u32 %s76, 1
          %s304 = smul.addr %s303, 32
          %s305 = scalar_lea.vmem [#allocation4], %s304
          %s306 = smul.u32 4, %s32
          %s308 = ssub.s32 512, 512
          %309 = vsyncadd %s302, %s308
          %s310 = smul.addr %s31, 4
          %s311 = sadd.s32 %s306, %s310
          %s312 = smul.addr %s311, 128
          %s313 = scalar_lea.hbm %s1, %s312
          %s314 = sshll.u32 %s305, 4
          %s315 = int_to_ptr.vmem [resolvable:$true] %s314
          %320 = dma.hbm_to_vmem [thread:$0]  %s313, 512, %s315, %s302, 128, 128, 8
        $region24: #{tpu_custom_call.1} parent=15 // pred_fallthru
          _
        // Predicated region
        $region25: #{tpu_custom_call.1} parent=15 // pred_check
          %p321 = pneg %p120
        $region26: #{tpu_custom_call.1} parent=15 // pred_check_branch
          %323 = sbr.rel (%p321) target = $region28
        $region27: #{tpu_custom_call.1} parent=15 // pred_region
          %s324 = sand.u32 %s24, 1
          %s325 = scalar_lea.sflag [#allocation5], %s324
          %s326 = sand.u32 %s110, 1
          %s327 = smul.addr %s326, 32
          %s328 = scalar_lea.vmem [#allocation6], %s327
          %s329 = ssub.s32 %s32, 1
          %p330 = scmp.gt.s32.totalorder %s329, 0
          %s331 = scalar_select %p330, %s329, 0
          %s332 = smul.u32 4, %s331
          %s334 = ssub.s32 512, 512
          %335 = vsyncadd %s325, %s334
          %s336 = smul.addr %s31, 4
          %s337 = sadd.s32 %s332, %s336
          %s338 = smul.addr %s337, 128
          %s339 = scalar_lea.hbm %s2, %s338
          %s340 = sshll.u32 %s328, 4
          %s341 = int_to_ptr.vmem [resolvable:$true] %s340
          %346 = dma.hbm_to_vmem [thread:$0]  %s339, 512, %s341, %s325, 128, 128, 8
        $region28: #{tpu_custom_call.1} parent=15 // pred_fallthru
          _
        // Predicated region
        $region29: #{tpu_custom_call.1} parent=15 // pred_check
          %p347 = pneg %p154
        $region30: #{tpu_custom_call.1} parent=15 // pred_check_branch
          %349 = sbr.rel (%p347) target = $region32
        $region31: #{tpu_custom_call.1} parent=15 // pred_region
          %s350 = sand.u32 %s24, 1
          %s351 = scalar_lea.sflag [#allocation8], %s350
          %s352 = sand.u32 %s144, 1
          %s353 = smul.addr %s352, 32
          %s354 = scalar_lea.vmem [#allocation7], %s353
          %s355 = sadd.s32 %s32, 1
          %p356 = scmp.lt.s32.totalorder %s355, 0
          %s357 = scalar_select %p356, %s355, 0
          %s358 = smul.u32 4, %s357
          %s360 = ssub.s32 512, 512
          %361 = vsyncadd %s351, %s360
          %s362 = smul.addr %s31, 4
          %s363 = sadd.s32 %s358, %s362
          %s364 = smul.addr %s363, 128
          %s365 = scalar_lea.hbm %s3, %s364
          %s366 = sshll.u32 %s354, 4
          %s367 = int_to_ptr.vmem [resolvable:$true] %s366
          %372 = dma.hbm_to_vmem [thread:$0]  %s365, 512, %s367, %s351, 128, 128, 8
        $region32: #{tpu_custom_call.1} parent=15 // pred_fallthru
          _
        // Predicated region
        $region33: #{tpu_custom_call.1} parent=15 // pred_check
          %p373 = pneg %p188
        $region34: #{tpu_custom_call.1} parent=15 // pred_check_branch
          %375 = sbr.rel (%p373) target = $region36
        $region35: #{tpu_custom_call.1} parent=15 // pred_region
          %s376 = sand.u32 %s24, 1
          %s377 = scalar_lea.sflag [#allocation8], %s376
          %s378 = sand.u32 %s178, 1
          %s379 = smul.addr %s378, 32
          %s380 = scalar_lea.vmem [#allocation9], %s379
          %s381 = ssub.s32 %s32, 1
          %p382 = scmp.gt.s32.totalorder %s381, 0
          %s383 = scalar_select %p382, %s381, 0
          %s384 = smul.u32 4, %s383
          %s386 = ssub.s32 512, 512
          %387 = vsyncadd %s377, %s386
          %s388 = smul.addr %s31, 4
          %s389 = sadd.s32 %s384, %s388
          %s390 = smul.addr %s389, 128
          %s391 = scalar_lea.hbm %s4, %s390
          %s392 = sshll.u32 %s380, 4
          %s393 = int_to_ptr.vmem [resolvable:$true] %s392
          %398 = dma.hbm_to_vmem [thread:$0]  %s391, 512, %s393, %s377, 128, 128, 8
        $region36: #{tpu_custom_call.1} parent=15 // pred_fallthru
          _
        // Predicated region
        $region37: #{tpu_custom_call.1} parent=15 // pred_check
          %p399 = pneg %p222
        $region38: #{tpu_custom_call.1} parent=15 // pred_check_branch
          %401 = sbr.rel (%p399) target = $region40
        $region39: #{tpu_custom_call.1} parent=15 // pred_region
          %s402 = sand.u32 %s212, 1
          %s403 = scalar_lea.sflag [#allocation11], %s402
          %s404 = sand.u32 %s212, 1
          %s405 = smul.addr %s404, 32
          %s406 = scalar_lea.vmem [#allocation10], %s405
          %s407 = sadd.s32 %s32, 1
          %p408 = scmp.lt.s32.totalorder %s407, 0
          %s409 = scalar_select %p408, %s407, 0
          %s410 = smul.u32 4, %s409
          %s412 = ssub.s32 512, 512
          %413 = vsyncadd %s403, %s412
          %s414 = smul.addr %s31, 4
          %s415 = sadd.s32 %s410, %s414
          %s416 = smul.addr %s415, 128
          %s417 = scalar_lea.hbm %s5, %s416
          %s418 = sshll.u32 %s406, 4
          %s419 = int_to_ptr.vmem [resolvable:$true] %s418
          %424 = dma.hbm_to_vmem [thread:$0]  %s417, 512, %s419, %s403, 128, 128, 8
        $region40: #{tpu_custom_call.1} parent=15 // pred_fallthru
          _
      $region16: #{tpu_custom_call.1} parent=5 // pred_fallthru
        _
      %p425 = scmp.le.s32.totalorder 1, %s24
      %p426 = scmp.lt.s32.totalorder %s24, 3
      %p427 = pnand %p425, %p426
      %p428 = pneg %p427
      // Predicated region
      $region41: #{tpu_custom_call.1} parent=5 // pred_check
        _
      $region42: #{tpu_custom_call.1} parent=5 // pred_check_branch
        %430 = sbr.rel (%p427) target = $region44
      $region43: #{tpu_custom_call.1} parent=5 // pred_region
        %s431 = ssub.s32 %s24, 1
        %s432 = sand.u32 %s51, 1
        %s433 = scalar_lea.sflag [#allocation3], %s432
        %s434 = sand.u32 %s51, 1
        %s435 = smul.addr %s434, 32
        %s436 = scalar_lea.vmem [#allocation2], %s435
        // Predicated region
        $region45: #{tpu_custom_call.1} parent=43 // pred_check
          %p437 = pneg %p64
        $region46: #{tpu_custom_call.1} parent=43 // pred_check_branch
          %439 = sbr.rel (%p437) target = $region48
        $region47: #{tpu_custom_call.1} parent=43 // pred_region
          %440 = dma.done %s433, 512
        $region48: #{tpu_custom_call.1} parent=43 // pred_fallthru
          _
        %s441 = sand.u32 %s29, 1
        %s442 = scalar_lea.sflag [#allocation5], %s441
        %s443 = sand.u32 %s79, 1
        %s444 = smul.addr %s443, 32
        %s445 = scalar_lea.vmem [#allocation4], %s444
        // Predicated region
        $region49: #{tpu_custom_call.1} parent=43 // pred_check
          %p446 = pneg %p92
        $region50: #{tpu_custom_call.1} parent=43 // pred_check_branch
          %448 = sbr.rel (%p446) target = $region52
        $region51: #{tpu_custom_call.1} parent=43 // pred_region
          %449 = dma.done %s442, 512
        $region52: #{tpu_custom_call.1} parent=43 // pred_fallthru
          _
        %s450 = sand.u32 %s29, 1
        %s451 = scalar_lea.sflag [#allocation5], %s450
        %s452 = sand.u32 %s113, 1
        %s453 = smul.addr %s452, 32
        %s454 = scalar_lea.vmem [#allocation6], %s453
        // Predicated region
        $region53: #{tpu_custom_call.1} parent=43 // pred_check
          %p455 = pneg %p126
        $region54: #{tpu_custom_call.1} parent=43 // pred_check_branch
          %457 = sbr.rel (%p455) target = $region56
        $region55: #{tpu_custom_call.1} parent=43 // pred_region
          %458 = dma.done %s451, 512
        $region56: #{tpu_custom_call.1} parent=43 // pred_fallthru
          _
        %s459 = sand.u32 %s29, 1
        %s460 = scalar_lea.sflag [#allocation8], %s459
        %s461 = sand.u32 %s147, 1
        %s462 = smul.addr %s461, 32
        %s463 = scalar_lea.vmem [#allocation7], %s462
        // Predicated region
        $region57: #{tpu_custom_call.1} parent=43 // pred_check
          %p464 = pneg %p160
        $region58: #{tpu_custom_call.1} parent=43 // pred_check_branch
          %466 = sbr.rel (%p464) target = $region60
        $region59: #{tpu_custom_call.1} parent=43 // pred_region
          %467 = dma.done %s460, 512
        $region60: #{tpu_custom_call.1} parent=43 // pred_fallthru
          _
        %s468 = sand.u32 %s29, 1
        %s469 = scalar_lea.sflag [#allocation8], %s468
        %s470 = sand.u32 %s181, 1
        %s471 = smul.addr %s470, 32
        %s472 = scalar_lea.vmem [#allocation9], %s471
        // Predicated region
        $region61: #{tpu_custom_call.1} parent=43 // pred_check
          %p473 = pneg %p194
        $region62: #{tpu_custom_call.1} parent=43 // pred_check_branch
          %475 = sbr.rel (%p473) target = $region64
        $region63: #{tpu_custom_call.1} parent=43 // pred_region
          %476 = dma.done %s469, 512
        $region64: #{tpu_custom_call.1} parent=43 // pred_fallthru
          _
        %s477 = sand.u32 %s215, 1
        %s478 = scalar_lea.sflag [#allocation11], %s477
        %s479 = sand.u32 %s215, 1
        %s480 = smul.addr %s479, 32
        %s481 = scalar_lea.vmem [#allocation10], %s480
        // Predicated region
        $region65: #{tpu_custom_call.1} parent=43 // pred_check
          %p482 = pneg %p228
        $region66: #{tpu_custom_call.1} parent=43 // pred_check_branch
          %484 = sbr.rel (%p482) target = $region68
        $region67: #{tpu_custom_call.1} parent=43 // pred_region
          %485 = dma.done %s478, 512
        $region68: #{tpu_custom_call.1} parent=43 // pred_fallthru
          _
        %s486 = sand.u32 %s51, 1
        %s487 = scalar_lea.sflag [#allocation3], %s486
        %s488 = sand.u32 %s51, 1
        %s489 = smul.addr %s488, 32
        %s490 = scalar_lea.vmem [#allocation2], %s489
        %p491 = pneg %p64
        %p492 = pneg %p61
        %s493 = sand.u32 %s29, 1
        %s494 = scalar_lea.sflag [#allocation5], %s493
        %s495 = sand.u32 %s79, 1
        %s496 = smul.addr %s495, 32
        %s497 = scalar_lea.vmem [#allocation4], %s496
        %p498 = pneg %p92
        %p499 = pneg %p89
        %s500 = sand.u32 %s29, 1
        %s501 = scalar_lea.sflag [#allocation5], %s500
        %s502 = sand.u32 %s113, 1
        %s503 = smul.addr %s502, 32
        %s504 = scalar_lea.vmem [#allocation6], %s503
        %p505 = pneg %p126
        %p506 = pneg %p123
        %s507 = sand.u32 %s29, 1
        %s508 = scalar_lea.sflag [#allocation8], %s507
        %s509 = sand.u32 %s147, 1
        %s510 = smul.addr %s509, 32
        %s511 = scalar_lea.vmem [#allocation7], %s510
        %p512 = pneg %p160
        %p513 = pneg %p157
        %s514 = sand.u32 %s29, 1
        %s515 = scalar_lea.sflag [#allocation8], %s514
        %s516 = sand.u32 %s181, 1
        %s517 = smul.addr %s516, 32
        %s518 = scalar_lea.vmem [#allocation9], %s517
        %p519 = pneg %p194
        %p520 = pneg %p191
        %s521 = sand.u32 %s215, 1
        %s522 = scalar_lea.sflag [#allocation11], %s521
        %s523 = sand.u32 %s215, 1
        %s524 = smul.addr %s523, 32
        %s525 = scalar_lea.vmem [#allocation10], %s524
        %p526 = pneg %p228
        %p527 = pneg %p225
        %p528 = pneg %p256
        %p529 = pneg %p253
        %p530 = scmp.lt.s32.totalorder %s33, 1
        %s531 = scalar_select %p530, %s33, 1
        %p532 = scmp.lt.s32.totalorder %s34, 0
        %s533 = scalar_select %p532, %s34, 0
        %s534 = smul.addr %s533, 2
        %s535 = smul.addr %s531, 2
        %s536 = sadd.s32 %s534, %s535
        %s537 = smul.addr %s536, 8
        %s538 = scalar_lea.vmem %s6, %s537
        %s539 = smul.u32 4, %s34
        %s540 = smul.u32 4, %s34
        %s541 = ssub.s32 %s34, 1
        %p542 = scmp.gt.s32.totalorder %s541, 0
        %s543 = scalar_select %p542, %s541, 0
        %s544 = smul.u32 4, %s543
        %s545 = sadd.s32 %s34, 1
        %p546 = scmp.lt.s32.totalorder %s545, 0
        %s547 = scalar_select %p546, %s545, 0
        %s548 = smul.u32 4, %s547
        %s549 = ssub.s32 %s34, 1
        %p550 = scmp.gt.s32.totalorder %s549, 0
        %s551 = scalar_select %p550, %s549, 0
        %s552 = smul.u32 4, %s551
        %s553 = sadd.s32 %s34, 1
        %p554 = scmp.lt.s32.totalorder %s553, 0
        %s555 = scalar_select %p554, %s553, 0
        %s556 = smul.u32 4, %s555
        %p557 = scmp.lt.s32.totalorder %s33, 1
        %s558 = scalar_select %p557, %s33, 1
        %p559 = scmp.lt.s32.totalorder %s34, 0
        %s560 = scalar_select %p559, %s34, 0
        %s561 = smul.addr %s560, 2
        %s562 = smul.addr %s558, 2
        %s563 = sadd.s32 %s561, %s562
        %s564 = smul.addr %s563, 8
        %s565 = scalar_lea.vmem %s6, %s564
        %v566 = vld [vmem:[%s436] sm:$0xff]
        %v567 = vld [vmem:[%s436 + $0x8] sm:$0xff]
        %v568 = vld [vmem:[%s436 + $0x10] sm:$0xff]
        %v569 = vld [vmem:[%s436 + $0x18] sm:$0xff]
        %vm570 = vcmp.ne.f32.partialorder %v566, %v566
        %vm571 = vcmp.ne.f32.partialorder %v567, %v567
        %vm572 = vcmp.ne.f32.partialorder %v568, %v568
        %vm573 = vcmp.ne.f32.partialorder %v569, %v569
        %v574 = vsel %vm570, 0.0, %v566
        %v575 = vsel %vm571, 0.0, %v567
        %v576 = vsel %vm572, 0.0, %v568
        %v577 = vsel %vm573, 0.0, %v569
        %v578 = vld [vmem:[%s445] sm:$0xff]
        %v579 = vld [vmem:[%s445 + $0x8] sm:$0xff]
        %v580 = vld [vmem:[%s445 + $0x10] sm:$0xff]
        %v581 = vld [vmem:[%s445 + $0x18] sm:$0xff]
        %vm582 = vcmp.gt.f32.partialorder %v578, 0.0
        %vm583 = vcmp.gt.f32.partialorder %v579, 0.0
        %vm584 = vcmp.gt.f32.partialorder %v580, 0.0
        %vm585 = vcmp.gt.f32.partialorder %v581, 0.0
        %v586 = vsel %vm582, 1, 0
        %v587 = vsel %vm583, 1, 0
        %v588 = vsel %vm584, 1, 0
        %v589 = vsel %vm585, 1, 0
        %v590 = vcvt.s32.f32 %v586
        %v591 = vcvt.s32.f32 %v587
        %v592 = vcvt.s32.f32 %v588
        %v593 = vcvt.s32.f32 %v589
        %v594 = vlaneseq
        %v595 = vshrl.u32 %v594, 7
        %v596 = vadd.s32 %v595, 8
        %v597 = vadd.s32 %v595, 16
        %v598 = vadd.s32 %v595, 24
        %v599 = vlaneseq
        %v600 = vand.u32 %v599, 127
        %vm601 = vcmp.lt.s32.totalorder %v600, 16
        %s602 = smul.u32 %s34, 32
        %v603 = vstv %s602
        %v604 = vadd.s32 %v603, %v595
        %v605 = vadd.s32 %v603, %v596
        %v606 = vadd.s32 %v603, %v597
        %v607 = vadd.s32 %v603, %v598
        %vm608 = vcmp.lt.s32.totalorder %v604, 16
        %vm609 = vcmp.lt.s32.totalorder %v605, 16
        %vm610 = vcmp.lt.s32.totalorder %v606, 16
        %vm611 = vcmp.lt.s32.totalorder %v607, 16
        %v612 = vsel %vm608, 1, 0
        %v613 = vsel %vm609, 1, 0
        %v614 = vsel %vm610, 1, 0
        %v615 = vsel %vm611, 1, 0
        %vm616 = vcmp.eq.s32.totalorder %v612, 1
        %vm617 = vcmp.eq.s32.totalorder %v613, 1
        %vm618 = vcmp.eq.s32.totalorder %v614, 1
        %vm619 = vcmp.eq.s32.totalorder %v615, 1
        %v620 = vsel %vm601, 1, 0
        %vm621 = vcmp.eq.s32.totalorder %v620, 1
        %vm622 = vmand %vm616, %vm621
        %vm623 = vmand %vm617, %vm621
        %vm624 = vmand %vm618, %vm621
        %vm625 = vmand %vm619, %vm621
        %v626 = vsel %vm622, 1, 0
        %v627 = vsel %vm623, 1, 0
        %v628 = vsel %vm624, 1, 0
        %v629 = vsel %vm625, 1, 0
        %v630 = vcvt.s32.f32 %v626
        %v631 = vcvt.s32.f32 %v627
        %v632 = vcvt.s32.f32 %v628
        %v633 = vcvt.s32.f32 %v629
        %v634 = vand.u32 2147483647, %v574
        %v635 = vand.u32 2147483647, %v575
        %v636 = vand.u32 2147483647, %v576
        %v637 = vand.u32 2147483647, %v577
        %v638 = vsub.f32 0.0, %v634
        %v639 = vsub.f32 0.0, %v635
        %v640 = vsub.f32 0.0, %v636
        %v641 = vsub.f32 0.0, %v637
        %v642 = vmul.f32 %v638, 1.442695
        %v643 = vpow.pop %v642
        %v644 = vmul.f32 %v639, 1.442695
        %v645 = vpow.pop %v644
        %v646 = vmul.f32 %v640, 1.442695
        %v647 = vpow.pop %v646
        %v648 = vmul.f32 %v641, 1.442695
        %v649 = vpow.pop %v648
        %v650 = vadd.f32 %v643, 1.0
        %v651 = vadd.f32 %v645, 1.0
        %v652 = vadd.f32 %v647, 1.0
        %v653 = vadd.f32 %v649, 1.0
        %v654 = vrcp.pop %v650
        %v655 = vrcp.pop %v651
        %v656 = vrcp.pop %v652
        %v657 = vrcp.pop %v653
        %v658 = vmul.f32 %v650, %v654
        %v659 = vmul.f32 %v651, %v655
        %v660 = vmul.f32 %v652, %v656
        %v661 = vmul.f32 %v653, %v657
        %v662 = vsub.f32 2.0, %v658
        %v663 = vsub.f32 2.0, %v659
        %v664 = vsub.f32 2.0, %v660
        %v665 = vsub.f32 2.0, %v661
        %v666 = vmul.f32 %v654, %v662
        %v667 = vmul.f32 %v655, %v663
        %v668 = vmul.f32 %v656, %v664
        %v669 = vmul.f32 %v657, %v665
        %v670 = vlog2.pop %v650
        %v671 = vmul.f32 %v670, 0.6931472
        %v672 = vlog2.pop %v651
        %v673 = vmul.f32 %v672, 0.6931472
        %v674 = vlog2.pop %v652
        %v675 = vmul.f32 %v674, 0.6931472
        %v676 = vlog2.pop %v653
        %v677 = vmul.f32 %v676, 0.6931472
        %v678 = vsub.f32 %v650, 1.0
        %v679 = vsub.f32 %v651, 1.0
        %v680 = vsub.f32 %v652, 1.0
        %v681 = vsub.f32 %v653, 1.0
        %v682 = vsub.f32 %v678, %v643
        %v683 = vsub.f32 %v679, %v645
        %v684 = vsub.f32 %v680, %v647
        %v685 = vsub.f32 %v681, %v649
        %v686 = vmul.f32 %v682, %v666
        %v687 = vmul.f32 %v683, %v667
        %v688 = vmul.f32 %v684, %v668
        %v689 = vmul.f32 %v685, %v669
        %v690 = vsub.f32 %v671, %v686
        %v691 = vsub.f32 %v673, %v687
        %v692 = vsub.f32 %v675, %v688
        %v693 = vsub.f32 %v677, %v689
        %v694 = vmax.f32 %v574, 0.0
        %v695 = vmax.f32 %v575, 0.0
        %v696 = vmax.f32 %v576, 0.0
        %v697 = vmax.f32 %v577, 0.0
        %v698 = vmul.f32 %v574, %v590
        %v699 = vmul.f32 %v575, %v591
        %v700 = vmul.f32 %v576, %v592
        %v701 = vmul.f32 %v577, %v593
        %v702 = vsub.f32 %v694, %v698
        %v703 = vsub.f32 %v695, %v699
        %v704 = vsub.f32 %v696, %v700
        %v705 = vsub.f32 %v697, %v701
        %v706 = vadd.f32 %v702, %v690
        %v707 = vadd.f32 %v703, %v691
        %v708 = vadd.f32 %v704, %v692
        %v709 = vadd.f32 %v705, %v693
        %vm710 = vcmp.ge.f32.partialorder %v574, 0.0
        %vm711 = vcmp.ge.f32.partialorder %v575, 0.0
        %vm712 = vcmp.ge.f32.partialorder %v576, 0.0
        %vm713 = vcmp.ge.f32.partialorder %v577, 0.0
        %v714 = vmul.f32 %v643, %v666
        %v715 = vmul.f32 %v645, %v667
        %v716 = vmul.f32 %v647, %v668
        %v717 = vmul.f32 %v649, %v669
        %v718 = vsel %vm710, %v666, %v714
        %v719 = vsel %vm711, %v667, %v715
        %v720 = vsel %vm712, %v668, %v716
        %v721 = vsel %vm713, %v669, %v717
        %v722 = vmul.f32 %v706, %v630
        %v723 = vmul.f32 %v707, %v631
        %v724 = vmul.f32 %v708, %v632
        %v725 = vmul.f32 %v709, %v633
        %v726 = vmul.f32 %v718, %v630
        %v727 = vmul.f32 %v719, %v631
        %v728 = vmul.f32 %v720, %v632
        %v729 = vmul.f32 %v721, %v633
        %p730 = scmp.gt.s32.totalorder %s34, 0
        %s731 = scalar_select %p730, 1, 0
        %s732 = scvt.s32.f32 %s731
        %p733 = scmp.lt.s32.totalorder %s34, 0
        %s734 = scalar_select %p733, 1, 0
        %s735 = scvt.s32.f32 %s734
        %v736 = vld [vmem:[%s454 + $0x18] sm:$0xff]
        %vm737 = vcmp.ne.f32.partialorder %v736, %v736
        %v738 = vsel %vm737, 0.0, %v736
        %v739 = vand.u32 2147483647, %v738
        %v740 = vsub.f32 0.0, %v739
        %v741 = vmul.f32 %v740, 1.442695
        %v742 = vpow.pop %v741
        %v743 = vadd.f32 %v742, 1.0
        %v744 = vrcp.pop %v743
        %v745 = vmul.f32 %v743, %v744
        %v746 = vsub.f32 2.0, %v745
        %v747 = vmul.f32 %v744, %v746
        %vm748 = vcmp.ge.f32.partialorder %v738, 0.0
        %v749 = vmul.f32 %v742, %v747
        %v750 = vsel %vm748, %v747, %v749
        %v751 = vstv %s732
        %v752 = vmul.f32 %v750, %v751
        %v753 = vld [vmem:[%s463] sm:$0xff]
        %vm754 = vcmp.ne.f32.partialorder %v753, %v753
        %v755 = vsel %vm754, 0.0, %v753
        %v756 = vand.u32 2147483647, %v755
        %v757 = vsub.f32 0.0, %v756
        %v758 = vmul.f32 %v757, 1.442695
        %v759 = vpow.pop %v758
        %v760 = vadd.f32 %v759, 1.0
        %v761 = vrcp.pop %v760
        %v762 = vmul.f32 %v760, %v761
        %v763 = vsub.f32 2.0, %v762
        %v764 = vmul.f32 %v761, %v763
        %vm765 = vcmp.ge.f32.partialorder %v755, 0.0
        %v766 = vmul.f32 %v759, %v764
        %v767 = vsel %vm765, %v764, %v766
        %v768 = vstv %s735
        %v769 = vmul.f32 %v767, %v768
        %v770 = vld [vmem:[%s472 + $0x18] sm:$0xff]
        %vm771 = vcmp.gt.f32.partialorder %v770, 0.0
        %v772 = vsel %vm771, 1, 0
        %v773 = vcvt.s32.f32 %v772
        %v774 = vmul.f32 %v773, %v751
        %v775 = vld [vmem:[%s481] sm:$0xff]
        %vm776 = vcmp.gt.f32.partialorder %v775, 0.0
        %v777 = vsel %vm776, 1, 0
        %v778 = vcvt.s32.f32 %v777
        %v779 = vmul.f32 %v778, %v768
        %v780 = vcvt.s32.f32 %v620
        %v781 = vmul.f32 %v752, %v780
        %v782 = vmul.f32 %v769, %v780
        %vm783 = vcmp.eq.s32.totalorder %v595, 0
        %vm784 = vcmp.eq.s32.totalorder %v596, 0
        %vm785 = vcmp.eq.s32.totalorder %v597, 0
        %vm786 = vcmp.eq.s32.totalorder %v598, 0
        %vm787 = vcmp.eq.s32.totalorder %v595, 31
        %vm788 = vcmp.eq.s32.totalorder %v596, 31
        %vm789 = vcmp.eq.s32.totalorder %v597, 31
        %vm790 = vcmp.eq.s32.totalorder %v598, 31
        %v791 = vrot.slane %v726, 7
        %v792 = vrot.slane %v727, 7
        %v793 = vrot.slane %v728, 7
        %v794 = vrot.slane %v729, 7
        %vm795 = vcmp.lt.s32.totalorder %v595, 1
        %v796 = vsel %vm795, %v793, %v794
        %v797 = vsel %vm795, %v792, %v793
        %v798 = vsel %vm795, %v791, %v792
        %v799 = vsel %vm795, %v794, %v791
        %v800 = vsel %vm783, 1, 0
        %v801 = vsel %vm784, 1, 0
        %v802 = vsel %vm785, 1, 0
        %v803 = vsel %vm786, 1, 0
        %vm804 = vcmp.eq.s32.totalorder %v800, 1
        %vm805 = vcmp.eq.s32.totalorder %v801, 1
        %vm806 = vcmp.eq.s32.totalorder %v802, 1
        %vm807 = vcmp.eq.s32.totalorder %v803, 1
        %v808 = vlaneseq
        %v809 = vshrl.u32 %v808, 7
        %v810 = vsub.s32 7, %v809
        %v811 = vrot.slane %v781, %v810
        %v812 = vsel %vm804, %v811, %v799
        %v813 = vsel %vm805, %v811, %v798
        %v814 = vsel %vm806, %v811, %v797
        %v815 = vsel %vm807, %v811, %v796
        %v816 = vmul.f32 %v726, 2.0
        %v817 = vmul.f32 %v727, 2.0
        %v818 = vmul.f32 %v728, 2.0
        %v819 = vmul.f32 %v729, 2.0
        %v820 = vadd.f32 %v812, %v816
        %v821 = vadd.f32 %v813, %v817
        %v822 = vadd.f32 %v814, %v818
        %v823 = vadd.f32 %v815, %v819
        %v824 = vrot.slane %v726, 1
        %v825 = vrot.slane %v727, 1
        %v826 = vrot.slane %v728, 1
        %v827 = vrot.slane %v729, 1
        %vm828 = vcmp.lt.s32.totalorder %v595, 7
        %v829 = vsel %vm828, %v826, %v827
        %v830 = vsel %vm828, %v825, %v826
        %v831 = vsel %vm828, %v824, %v825
        %v832 = vsel %vm828, %v827, %v824
        %v833 = vsel %vm787, 1, 0
        %v834 = vsel %vm788, 1, 0
        %v835 = vsel %vm789, 1, 0
        %v836 = vsel %vm790, 1, 0
        %vm837 = vcmp.eq.s32.totalorder %v833, 1
        %vm838 = vcmp.eq.s32.totalorder %v834, 1
        %vm839 = vcmp.eq.s32.totalorder %v835, 1
        %vm840 = vcmp.eq.s32.totalorder %v836, 1
        %v841 = vlaneseq
        %v842 = vshrl.u32 %v841, 7
        %v843 = vsub.s32 0, %v842
        %v844 = vrot.slane %v782, %v843
        %v845 = vsel %vm837, %v844, %v831
        %v846 = vsel %vm838, %v844, %v830
        %v847 = vsel %vm839, %v844, %v829
        %v848 = vsel %vm840, %v844, %v832
        %v849 = vadd.f32 %v820, %v845
        %v850 = vadd.f32 %v821, %v846
        %v851 = vadd.f32 %v822, %v847
        %v852 = vadd.f32 %v823, %v848
        %853 = vrot.lane.b32.xlu0 %v849, 127
        %v854 = vpop.permute.xlu0 %853
        %855 = vrot.lane.b32.xlu0 %v850, 127
        %v856 = vpop.permute.xlu0 %855
        %857 = vrot.lane.b32.xlu0 %v851, 127
        %v858 = vpop.permute.xlu0 %857
        %859 = vrot.lane.b32.xlu0 %v852, 127
        %v860 = vpop.permute.xlu0 %859
        %861 = vrot.lane.b32.xlu0 %v849, 1
        %v862 = vpop.permute.xlu0 %861
        %863 = vrot.lane.b32.xlu0 %v850, 1
        %v864 = vpop.permute.xlu0 %863
        %865 = vrot.lane.b32.xlu0 %v851, 1
        %v866 = vpop.permute.xlu0 %865
        %867 = vrot.lane.b32.xlu0 %v852, 1
        %v868 = vpop.permute.xlu0 %867
        %v869 = vsub.f32 %v854, %v862
        %v870 = vsub.f32 %v856, %v864
        %v871 = vsub.f32 %v858, %v866
        %v872 = vsub.f32 %v860, %v868
        %873 = vrot.lane.b32.xlu0 %v726, 1
        %v874 = vpop.permute.xlu0 %873
        %875 = vrot.lane.b32.xlu0 %v727, 1
        %v876 = vpop.permute.xlu0 %875
        %877 = vrot.lane.b32.xlu0 %v728, 1
        %v878 = vpop.permute.xlu0 %877
        %879 = vrot.lane.b32.xlu0 %v729, 1
        %v880 = vpop.permute.xlu0 %879
        %v881 = vadd.f32 %v874, %v816
        %v882 = vadd.f32 %v876, %v817
        %v883 = vadd.f32 %v878, %v818
        %v884 = vadd.f32 %v880, %v819
        %885 = vrot.lane.b32.xlu0 %v726, 127
        %v886 = vpop.permute.xlu0 %885
        %887 = vrot.lane.b32.xlu0 %v727, 127
        %v888 = vpop.permute.xlu0 %887
        %889 = vrot.lane.b32.xlu0 %v728, 127
        %v890 = vpop.permute.xlu0 %889
        %891 = vrot.lane.b32.xlu0 %v729, 127
        %v892 = vpop.permute.xlu0 %891
        %v893 = vadd.f32 %v881, %v886
        %v894 = vadd.f32 %v882, %v888
        %v895 = vadd.f32 %v883, %v890
        %v896 = vadd.f32 %v884, %v892
        %v898 = vrot.slane %v781, 7
        %900 = vrot.lane.b32.xlu0 %v898, 1
        %v901 = vpop.permute.xlu0 %900
        %v902 = vmul.f32 %v781, 2.0
        %v904 = vrot.slane %v902, 7
        %v906 = vadd.f32 %v901, %v904
        %907 = vrot.lane.b32.xlu0 %v898, 127
        %v908 = vpop.permute.xlu0 %907
        %v909 = vadd.f32 %v906, %v908
        %910 = vrot.lane.b32.xlu0 %v782, 1
        %v911 = vpop.permute.xlu0 %910
        %v912 = vmul.f32 %v782, 2.0
        %v913 = vadd.f32 %v911, %v912
        %914 = vrot.lane.b32.xlu0 %v782, 127
        %v915 = vpop.permute.xlu0 %914
        %v916 = vadd.f32 %v913, %v915
        %v917 = vrot.slane %v893, 1
        %v918 = vrot.slane %v894, 1
        %v919 = vrot.slane %v895, 1
        %v920 = vrot.slane %v896, 1
        %v921 = vsel %vm828, %v919, %v920
        %v922 = vsel %vm828, %v918, %v919
        %v923 = vsel %vm828, %v917, %v918
        %v924 = vsel %vm828, %v920, %v917
        %v925 = vlaneseq
        %v926 = vshrl.u32 %v925, 7
        %v927 = vsub.s32 0, %v926
        %v928 = vrot.slane %v916, %v927
        %v929 = vsel %vm837, %v928, %v923
        %v930 = vsel %vm838, %v928, %v922
        %v931 = vsel %vm839, %v928, %v921
        %v932 = vsel %vm840, %v928, %v924
        %v933 = vrot.slane %v893, 7
        %v934 = vrot.slane %v894, 7
        %v935 = vrot.slane %v895, 7
        %v936 = vrot.slane %v896, 7
        %v937 = vsel %vm795, %v935, %v936
        %v938 = vsel %vm795, %v934, %v935
        %v939 = vsel %vm795, %v933, %v934
        %v940 = vsel %vm795, %v936, %v933
        %v941 = vlaneseq
        %v942 = vshrl.u32 %v941, 7
        %v943 = vsub.s32 0, %v942
        %v944 = vrot.slane %v909, %v943
        %v945 = vsel %vm804, %v944, %v940
        %v946 = vsel %vm805, %v944, %v939
        %v947 = vsel %vm806, %v944, %v938
        %v948 = vsel %vm807, %v944, %v937
        %v949 = vsub.f32 %v929, %v945
        %v950 = vsub.f32 %v930, %v946
        %v951 = vsub.f32 %v931, %v947
        %v952 = vsub.f32 %v932, %v948
        %v953 = vmul.f32 %v869, %v869
        %v954 = vmul.f32 %v870, %v870
        %v955 = vmul.f32 %v871, %v871
        %v956 = vmul.f32 %v872, %v872
        %v957 = vmul.f32 %v949, %v949
        %v958 = vmul.f32 %v950, %v950
        %v959 = vmul.f32 %v951, %v951
        %v960 = vmul.f32 %v952, %v952
        %v961 = vadd.f32 %v953, %v957
        %v962 = vadd.f32 %v954, %v958
        %v963 = vadd.f32 %v955, %v959
        %v964 = vadd.f32 %v956, %v960
        %v965 = vrsqrt.pop %v961
        %v966 = vmul.f32 %v961, %v965
        %vm967 = vcmp.eq.f32.partialorder %v961, inf
        %v968 = vsel %vm967, %v961, %v966
        %vm969 = vcmp.eq.f32.partialorder %v961, 0.0
        %v970 = vand.u32 %v961, 2147483648
        %v971 = vsel %vm969, %v970, %v968
        %v972 = vrsqrt.pop %v962
        %v973 = vmul.f32 %v962, %v972
        %vm974 = vcmp.eq.f32.partialorder %v962, inf
        %v975 = vsel %vm974, %v962, %v973
        %vm976 = vcmp.eq.f32.partialorder %v962, 0.0
        %v977 = vand.u32 %v962, 2147483648
        %v978 = vsel %vm976, %v977, %v975
        %v979 = vrsqrt.pop %v963
        %v980 = vmul.f32 %v963, %v979
        %vm981 = vcmp.eq.f32.partialorder %v963, inf
        %v982 = vsel %vm981, %v963, %v980
        %vm983 = vcmp.eq.f32.partialorder %v963, 0.0
        %v984 = vand.u32 %v963, 2147483648
        %v985 = vsel %vm983, %v984, %v982
        %v986 = vrsqrt.pop %v964
        %v987 = vmul.f32 %v964, %v986
        %vm988 = vcmp.eq.f32.partialorder %v964, inf
        %v989 = vsel %vm988, %v964, %v987
        %vm990 = vcmp.eq.f32.partialorder %v964, 0.0
        %v991 = vand.u32 %v964, 2147483648
        %v992 = vsel %vm990, %v991, %v989
        %v993 = vrot.slane %v590, 7
        %v994 = vrot.slane %v591, 7
        %v995 = vrot.slane %v592, 7
        %v996 = vrot.slane %v593, 7
        %v997 = vsel %vm795, %v995, %v996
        %v998 = vsel %vm795, %v994, %v995
        %v999 = vsel %vm795, %v993, %v994
        %v1000 = vsel %vm795, %v996, %v993
        %v1001 = vlaneseq
        %v1002 = vshrl.u32 %v1001, 7
        %v1003 = vsub.s32 7, %v1002
        %v1004 = vrot.slane %v774, %v1003
        %v1005 = vsel %vm804, %v1004, %v1000
        %v1006 = vsel %vm805, %v1004, %v999
        %v1007 = vsel %vm806, %v1004, %v998
        %v1008 = vsel %vm807, %v1004, %v997
        %v1009 = vmul.f32 %v590, 2.0
        %v1010 = vmul.f32 %v591, 2.0
        %v1011 = vmul.f32 %v592, 2.0
        %v1012 = vmul.f32 %v593, 2.0
        %v1013 = vadd.f32 %v1005, %v1009
        %v1014 = vadd.f32 %v1006, %v1010
        %v1015 = vadd.f32 %v1007, %v1011
        %v1016 = vadd.f32 %v1008, %v1012
        %v1017 = vrot.slane %v590, 1
        %v1018 = vrot.slane %v591, 1
        %v1019 = vrot.slane %v592, 1
        %v1020 = vrot.slane %v593, 1
        %v1021 = vsel %vm828, %v1019, %v1020
        %v1022 = vsel %vm828, %v1018, %v1019
        %v1023 = vsel %vm828, %v1017, %v1018
        %v1024 = vsel %vm828, %v1020, %v1017
        %v1025 = vlaneseq
        %v1026 = vshrl.u32 %v1025, 7
        %v1027 = vsub.s32 0, %v1026
        %v1028 = vrot.slane %v779, %v1027
        %v1029 = vsel %vm837, %v1028, %v1023
        %v1030 = vsel %vm838, %v1028, %v1022
        %v1031 = vsel %vm839, %v1028, %v1021
        %v1032 = vsel %vm840, %v1028, %v1024
        %v1033 = vadd.f32 %v1013, %v1029
        %v1034 = vadd.f32 %v1014, %v1030
        %v1035 = vadd.f32 %v1015, %v1031
        %v1036 = vadd.f32 %v1016, %v1032
        %1037 = vrot.lane.b32.xlu0 %v1033, 127
        %v1038 = vpop.permute.xlu0 %1037
        %1039 = vrot.lane.b32.xlu0 %v1034, 127
        %v1040 = vpop.permute.xlu0 %1039
        %1041 = vrot.lane.b32.xlu0 %v1035, 127
        %v1042 = vpop.permute.xlu0 %1041
        %1043 = vrot.lane.b32.xlu0 %v1036, 127
        %v1044 = vpop.permute.xlu0 %1043
        %1045 = vrot.lane.b32.xlu0 %v1033, 1
        %v1046 = vpop.permute.xlu0 %1045
        %1047 = vrot.lane.b32.xlu0 %v1034, 1
        %v1048 = vpop.permute.xlu0 %1047
        %1049 = vrot.lane.b32.xlu0 %v1035, 1
        %v1050 = vpop.permute.xlu0 %1049
        %1051 = vrot.lane.b32.xlu0 %v1036, 1
        %v1052 = vpop.permute.xlu0 %1051
        %v1053 = vsub.f32 %v1038, %v1046
        %v1054 = vsub.f32 %v1040, %v1048
        %v1055 = vsub.f32 %v1042, %v1050
        %v1056 = vsub.f32 %v1044, %v1052
        %1057 = vrot.lane.b32.xlu0 %v590, 1
        %v1058 = vpop.permute.xlu0 %1057
        %1059 = vrot.lane.b32.xlu0 %v591, 1
        %v1060 = vpop.permute.xlu0 %1059
        %1061 = vrot.lane.b32.xlu0 %v592, 1
        %v1062 = vpop.permute.xlu0 %1061
        %1063 = vrot.lane.b32.xlu0 %v593, 1
        %v1064 = vpop.permute.xlu0 %1063
        %v1065 = vadd.f32 %v1058, %v1009
        %v1066 = vadd.f32 %v1060, %v1010
        %v1067 = vadd.f32 %v1062, %v1011
        %v1068 = vadd.f32 %v1064, %v1012
        %1069 = vrot.lane.b32.xlu0 %v590, 127
        %v1070 = vpop.permute.xlu0 %1069
        %1071 = vrot.lane.b32.xlu0 %v591, 127
        %v1072 = vpop.permute.xlu0 %1071
        %1073 = vrot.lane.b32.xlu0 %v592, 127
        %v1074 = vpop.permute.xlu0 %1073
        %1075 = vrot.lane.b32.xlu0 %v593, 127
        %v1076 = vpop.permute.xlu0 %1075
        %v1077 = vadd.f32 %v1065, %v1070
        %v1078 = vadd.f32 %v1066, %v1072
        %v1079 = vadd.f32 %v1067, %v1074
        %v1080 = vadd.f32 %v1068, %v1076
        %v1082 = vrot.slane %v774, 7
        %1084 = vrot.lane.b32.xlu0 %v1082, 1
        %v1085 = vpop.permute.xlu0 %1084
        %v1086 = vmul.f32 %v774, 2.0
        %v1088 = vrot.slane %v1086, 7
        %v1090 = vadd.f32 %v1085, %v1088
        %1091 = vrot.lane.b32.xlu0 %v1082, 127
        %v1092 = vpop.permute.xlu0 %1091
        %v1093 = vadd.f32 %v1090, %v1092
        %1094 = vrot.lane.b32.xlu0 %v779, 1
        %v1095 = vpop.permute.xlu0 %1094
        %v1096 = vmul.f32 %v779, 2.0
        %v1097 = vadd.f32 %v1095, %v1096
        %1098 = vrot.lane.b32.xlu0 %v779, 127
        %v1099 = vpop.permute.xlu0 %1098
        %v1100 = vadd.f32 %v1097, %v1099
        %v1101 = vrot.slane %v1077, 1
        %v1102 = vrot.slane %v1078, 1
        %v1103 = vrot.slane %v1079, 1
        %v1104 = vrot.slane %v1080, 1
        %v1105 = vsel %vm828, %v1103, %v1104
        %v1106 = vsel %vm828, %v1102, %v1103
        %v1107 = vsel %vm828, %v1101, %v1102
        %v1108 = vsel %vm828, %v1104, %v1101
        %v1109 = vlaneseq
        %v1110 = vshrl.u32 %v1109, 7
        %v1111 = vsub.s32 0, %v1110
        %v1112 = vrot.slane %v1100, %v1111
        %v1113 = vsel %vm837, %v1112, %v1107
        %v1114 = vsel %vm838, %v1112, %v1106
        %v1115 = vsel %vm839, %v1112, %v1105
        %v1116 = vsel %vm840, %v1112, %v1108
        %v1117 = vrot.slane %v1077, 7
        %v1118 = vrot.slane %v1078, 7
        %v1119 = vrot.slane %v1079, 7
        %v1120 = vrot.slane %v1080, 7
        %v1121 = vsel %vm795, %v1119, %v1120
        %v1122 = vsel %vm795, %v1118, %v1119
        %v1123 = vsel %vm795, %v1117, %v1118
        %v1124 = vsel %vm795, %v1120, %v1117
        %v1125 = vlaneseq
        %v1126 = vshrl.u32 %v1125, 7
        %v1127 = vsub.s32 0, %v1126
        %v1128 = vrot.slane %v1093, %v1127
        %v1129 = vsel %vm804, %v1128, %v1124
        %v1130 = vsel %vm805, %v1128, %v1123
        %v1131 = vsel %vm806, %v1128, %v1122
        %v1132 = vsel %vm807, %v1128, %v1121
        %v1133 = vsub.f32 %v1113, %v1129
        %v1134 = vsub.f32 %v1114, %v1130
        %v1135 = vsub.f32 %v1115, %v1131
        %v1136 = vsub.f32 %v1116, %v1132
        %v1137 = vmul.f32 %v1053, %v1053
        %v1138 = vmul.f32 %v1054, %v1054
        %v1139 = vmul.f32 %v1055, %v1055
        %v1140 = vmul.f32 %v1056, %v1056
        %v1141 = vmul.f32 %v1133, %v1133
        %v1142 = vmul.f32 %v1134, %v1134
        %v1143 = vmul.f32 %v1135, %v1135
        %v1144 = vmul.f32 %v1136, %v1136
        %v1145 = vadd.f32 %v1137, %v1141
        %v1146 = vadd.f32 %v1138, %v1142
        %v1147 = vadd.f32 %v1139, %v1143
        %v1148 = vadd.f32 %v1140, %v1144
        %v1149 = vrsqrt.pop %v1145
        %v1150 = vmul.f32 %v1145, %v1149
        %vm1151 = vcmp.eq.f32.partialorder %v1145, inf
        %v1152 = vsel %vm1151, %v1145, %v1150
        %vm1153 = vcmp.eq.f32.partialorder %v1145, 0.0
        %v1154 = vand.u32 %v1145, 2147483648
        %v1155 = vsel %vm1153, %v1154, %v1152
        %v1156 = vrsqrt.pop %v1146
        %v1157 = vmul.f32 %v1146, %v1156
        %vm1158 = vcmp.eq.f32.partialorder %v1146, inf
        %v1159 = vsel %vm1158, %v1146, %v1157
        %vm1160 = vcmp.eq.f32.partialorder %v1146, 0.0
        %v1161 = vand.u32 %v1146, 2147483648
        %v1162 = vsel %vm1160, %v1161, %v1159
        %v1163 = vrsqrt.pop %v1147
        %v1164 = vmul.f32 %v1147, %v1163
        %vm1165 = vcmp.eq.f32.partialorder %v1147, inf
        %v1166 = vsel %vm1165, %v1147, %v1164
        %vm1167 = vcmp.eq.f32.partialorder %v1147, 0.0
        %v1168 = vand.u32 %v1147, 2147483648
        %v1169 = vsel %vm1167, %v1168, %v1166
        %v1170 = vrsqrt.pop %v1148
        %v1171 = vmul.f32 %v1148, %v1170
        %vm1172 = vcmp.eq.f32.partialorder %v1148, inf
        %v1173 = vsel %vm1172, %v1148, %v1171
        %vm1174 = vcmp.eq.f32.partialorder %v1148, 0.0
        %v1175 = vand.u32 %v1148, 2147483648
        %v1176 = vsel %vm1174, %v1175, %v1173
        %v1177 = vmul.f32 %v971, %v630
        %v1178 = vmul.f32 %v978, %v631
        %v1179 = vmul.f32 %v985, %v632
        %v1180 = vmul.f32 %v992, %v633
        %v1181 = vmul.f32 %v1155, %v630
        %v1182 = vmul.f32 %v1162, %v631
        %v1183 = vmul.f32 %v1169, %v632
        %v1184 = vmul.f32 %v1176, %v633
        %v1185 = vadd.f32 %v722, %v723
        %v1186 = vadd.f32 %v1185, %v724
        %v1187 = vadd.f32 %v1186, %v725
        %v1188 = vrot.slane %v1187, 4
        %v1189 = vadd.f32 %v1187, %v1188
        %v1190 = vrot.slane %v1189, 2
        %v1191 = vadd.f32 %v1189, %v1190
        %v1192 = vrot.slane %v1191, 1
        %v1193 = vadd.f32 %v1191, %v1192
        %v1194 = vmul.f32 %v726, %v590
        %v1195 = vmul.f32 %v727, %v591
        %v1196 = vmul.f32 %v728, %v592
        %v1197 = vmul.f32 %v729, %v593
        %v1198 = vadd.f32 %v1194, %v1195
        %v1199 = vadd.f32 %v1198, %v1196
        %v1200 = vadd.f32 %v1199, %v1197
        %v1201 = vrot.slane %v1200, 4
        %v1202 = vadd.f32 %v1200, %v1201
        %v1203 = vrot.slane %v1202, 2
        %v1204 = vadd.f32 %v1202, %v1203
        %v1205 = vrot.slane %v1204, 1
        %v1206 = vadd.f32 %v1204, %v1205
        %v1207 = vadd.f32 %v726, %v727
        %v1208 = vadd.f32 %v1207, %v728
        %v1209 = vadd.f32 %v1208, %v729
        %v1210 = vrot.slane %v1209, 4
        %v1211 = vadd.f32 %v1209, %v1210
        %v1212 = vrot.slane %v1211, 2
        %v1213 = vadd.f32 %v1211, %v1212
        %v1214 = vrot.slane %v1213, 1
        %v1215 = vadd.f32 %v1213, %v1214
        %v1216 = vadd.f32 %v590, %v591
        %v1217 = vadd.f32 %v1216, %v592
        %v1218 = vadd.f32 %v1217, %v593
        %v1219 = vrot.slane %v1218, 4
        %v1220 = vadd.f32 %v1218, %v1219
        %v1221 = vrot.slane %v1220, 2
        %v1222 = vadd.f32 %v1220, %v1221
        %v1223 = vrot.slane %v1222, 1
        %v1224 = vadd.f32 %v1222, %v1223
        %v1225 = vmul.f32 %v1177, %v1181
        %v1226 = vmul.f32 %v1178, %v1182
        %v1227 = vmul.f32 %v1179, %v1183
        %v1228 = vmul.f32 %v1180, %v1184
        %v1229 = vadd.f32 %v1225, %v1226
        %v1230 = vadd.f32 %v1229, %v1227
        %v1231 = vadd.f32 %v1230, %v1228
        %v1232 = vrot.slane %v1231, 4
        %v1233 = vadd.f32 %v1231, %v1232
        %v1234 = vrot.slane %v1233, 2
        %v1235 = vadd.f32 %v1233, %v1234
        %v1236 = vrot.slane %v1235, 1
        %v1237 = vadd.f32 %v1235, %v1236
        %v1238 = vadd.f32 %v1177, %v1178
        %v1239 = vadd.f32 %v1238, %v1179
        %v1240 = vadd.f32 %v1239, %v1180
        %v1241 = vrot.slane %v1240, 4
        %v1242 = vadd.f32 %v1240, %v1241
        %v1243 = vrot.slane %v1242, 2
        %v1244 = vadd.f32 %v1242, %v1243
        %v1245 = vrot.slane %v1244, 1
        %v1246 = vadd.f32 %v1244, %v1245
        %v1247 = vadd.f32 %v1181, %v1182
        %v1248 = vadd.f32 %v1247, %v1183
        %v1249 = vadd.f32 %v1248, %v1184
        %v1250 = vrot.slane %v1249, 4
        %v1251 = vadd.f32 %v1249, %v1250
        %v1252 = vrot.slane %v1251, 2
        %v1253 = vadd.f32 %v1251, %v1252
        %v1254 = vrot.slane %v1253, 1
        %v1255 = vadd.f32 %v1253, %v1254
        %v1256 = vmax.f32 %v1177, %v1178
        %v1257 = vmax.f32 %v1179, %v1180
        %v1258 = vmax.f32 %v1256, %v1257
        %v1259 = vrot.slane %v1258, 4
        %v1260 = vmax.f32 %v1258, %v1259
        %v1261 = vrot.slane %v1260, 2
        %v1262 = vmax.f32 %v1260, %v1261
        %v1263 = vrot.slane %v1262, 1
        %v1264 = vmax.f32 %v1262, %v1263
        %v1265 = vmax.f32 %v1181, %v1182
        %v1266 = vmax.f32 %v1183, %v1184
        %v1267 = vmax.f32 %v1265, %v1266
        %v1268 = vrot.slane %v1267, 4
        %v1269 = vmax.f32 %v1267, %v1268
        %v1270 = vrot.slane %v1269, 2
        %v1271 = vmax.f32 %v1269, %v1270
        %v1272 = vrot.slane %v1271, 1
        %v1273 = vmax.f32 %v1271, %v1272
        %1274 = vst [vmem:[%s565] sm:$0x1] %v1193
        %1275 = vst [vmem:[%s565 + $0x1] sm:$0x1] %v1206
        %1276 = vst [vmem:[%s565 + $0x2] sm:$0x1] %v1215
        %1277 = vst [vmem:[%s565 + $0x3] sm:$0x1] %v1224
        %1278 = vst [vmem:[%s565 + $0x4] sm:$0x1] %v1237
        %1279 = vst [vmem:[%s565 + $0x5] sm:$0x1] %v1246
        %1280 = vst [vmem:[%s565 + $0x6] sm:$0x1] %v1255
        %1281 = vst [vmem:[%s565 + $0x7] sm:$0x1] %v1264
        %1282 = vst [vmem:[%s565 + $0x8] sm:$0x1] %v1273
        %p1283 = scmp.lt.s32.totalorder %s33, 1
        %s1284 = scalar_select %p1283, %s33, 1
        %p1285 = scmp.lt.s32.totalorder %s34, 0
        %s1286 = scalar_select %p1285, %s34, 0
        %s1287 = smul.addr %s1286, 2
        %s1288 = smul.addr %s1284, 2
        %s1289 = sadd.s32 %s1287, %s1288
        %s1290 = smul.addr %s1289, 8
        %s1291 = scalar_lea.vmem %s6, %s1290
        // Predicated region
        $region69: #{tpu_custom_call.1} parent=43 // pred_check
          %p1292 = pneg %p253
        $region70: #{tpu_custom_call.1} parent=43 // pred_check_branch
          %1294 = sbr.rel (%p1292) target = $region72
        $region71: #{tpu_custom_call.1} parent=43 // pred_region
          _
        $region72: #{tpu_custom_call.1} parent=43 // pred_fallthru
          _
      $region44: #{tpu_custom_call.1} parent=5 // pred_fallthru
        _
      %p1295 = scmp.le.s32.totalorder 2, %s24
      // Predicated region
      $region73: #{tpu_custom_call.1} parent=5 // pred_check
        %p1296 = pneg %p1295
      $region74: #{tpu_custom_call.1} parent=5 // pred_check_branch
        %1298 = sbr.rel (%p1296) target = $region76
      $region75: #{tpu_custom_call.1} parent=5 // pred_region
        %s1299 = ssub.s32 %s24, 2
        // Predicated region
        $region77: #{tpu_custom_call.1} parent=75 // pred_check
          %p1300 = pneg %p259
        $region78: #{tpu_custom_call.1} parent=75 // pred_check_branch
          %1302 = sbr.rel (%p1300) target = $region80
        $region79: #{tpu_custom_call.1} parent=75 // pred_region
          %p1303 = scmp.lt.s32.totalorder %s35, 1
          %s1304 = scalar_select %p1303, %s35, 1
          %p1305 = scmp.lt.s32.totalorder %s36, 0
          %s1306 = scalar_select %p1305, %s36, 0
          %s1307 = smul.addr %s1306, 2
          %s1308 = smul.addr %s1304, 2
          %s1309 = sadd.s32 %s1307, %s1308
          %s1310 = smul.addr %s1309, 8
          %s1311 = scalar_lea.vmem %s6, %s1310
        $region80: #{tpu_custom_call.1} parent=75 // pred_fallthru
          _
      $region76: #{tpu_custom_call.1} parent=5 // pred_fallthru
        _
    $region6: #{tpu_custom_call.1} parent=1 // loop_footer
      %s28 = sadd.s32 1, %s24
    $region7: #{tpu_custom_call.1} parent=1 // loop_footer_branch
      %23 = sbr.rel target = $region3
    $region8: #{tpu_custom_call.1} parent=1 // loop_exit
      _
    %1312 = vsyncpa [#allocation3], 1
    %s1313 = scalar_lea.sflag [#allocation3], 1
    %1314 = vsyncpa %s1313, 1
    %1315 = vsyncpa [#allocation5], 1
    %s1316 = scalar_lea.sflag [#allocation5], 1
    %1317 = vsyncpa %s1316, 1
    %1318 = vsyncpa [#allocation8], 1
    %s1319 = scalar_lea.sflag [#allocation8], 1
    %1320 = vsyncpa %s1319, 1
    %1321 = vsyncpa [#allocation11], 1
    %s1322 = scalar_lea.sflag [#allocation11], 1
    %1323 = vsyncpa %s1322, 1

</llo_original>
